<compile_context>
chip_gen: v6e
topology: v6e:2x2x1
jax: 0.10.0
libtpu: 0.0.40
codegen_flags: <defaults>
</compile_context>

<pallas_src>
import functools

import jax
import jax.numpy as jnp
from jax.experimental import pallas as pl
from jax.experimental.pallas import tpu as pltpu


def _round_up(x, m):
    return ((x + m - 1) // m) * m


def _make_kernel(hidden, t_blk, seq_len, bp, dual_x):
    """Build the bidirectional-LSTM kernel.

    Refs (dual_x=True):
      xf_ref : (t_blk*Bp, I) bf16   forward-ordered time block (time-major,
                                     Bp rows per timestep)
      xb_ref : (t_blk*Bp, I) bf16   same x, blocks walked in reverse
      len_ref: (Bp, 1)       int32  valid lengths per stacked-batch row
      wih_*  : (I, 4H) bf16, whh_*: (H, 4H) bf16, b_*: (1, 4H) f32
               gate column order [i, f, o, g]; BN + b_hh folded in.
      hf/hb  : (Bp, H) f32 outputs, double as resident h carries
      cf/cb  : (Bp, H) f32 scratch c carries
      gxf/gxb: (t_blk*Bp, 4H) f32 scratch for the hoisted input projection
    When dual_x=False (nb == 1) the second x ref is omitted and xb_ref=xf_ref.
    """
    H = hidden

    def kernel(*refs):
        if dual_x:
            (xf_ref, xb_ref, len_ref, wihf, whhf, bf,
             wihb, whhb, bb, hf_ref, hb_ref,
             cf_sc, cb_sc, gxf_sc, gxb_sc) = refs
        else:
            (xf_ref, len_ref, wihf, whhf, bf,
             wihb, whhb, bb, hf_ref, hb_ref,
             cf_sc, cb_sc, gxf_sc, gxb_sc) = refs
            xb_ref = xf_ref

        tb = pl.program_id(0)
        t0 = tb * t_blk

        @pl.when(tb == 0)
        def _():
            hf_ref[...] = jnp.zeros_like(hf_ref)
            hb_ref[...] = jnp.zeros_like(hb_ref)
            cf_sc[...] = jnp.zeros_like(cf_sc)
            cb_sc[...] = jnp.zeros_like(cb_sc)

        # ---- hoisted input projection: one big MXU matmul per block, bias
        # folded in, result parked in VMEM scratch --------------------------
        gxf_sc[...] = jnp.dot(xf_ref[...], wihf[...],
                              preferred_element_type=jnp.float32) + bf[...]
        gxb_sc[...] = jnp.dot(xb_ref[...], wihb[...],
                              preferred_element_type=jnp.float32) + bb[...]

        # ---- hoisted (loop-invariant) reads --------------------------------
        lens = len_ref[...]            # (Bp, 1) int32
        w_hh_f = whhf[...]             # (H, 4H) bf16
        w_hh_b = whhb[...]

        def one_dir(gx, w_hh, h, c, t_idx):
            # Only the tiny recurrent matmul stays on the serial chain.
            g = gx + jnp.dot(h.astype(w_hh.dtype), w_hh,
                             preferred_element_type=jnp.float32)   # (Bp, 4H)
            sig = jax.nn.sigmoid(g[:, :3 * H])        # grouped [i | f | o]
            i_g = sig[:, 0 * H:1 * H]
            f_g = sig[:, 1 * H:2 * H]
            o_g = sig[:, 2 * H:3 * H]
            g_g = jnp.tanh(g[:, 3 * H:4 * H])
            c_new = f_g * c + i_g * g_g
            h_new = o_g * jnp.tanh(c_new)
            keep = t_idx < lens                       # (Bp, 1) bool
            return jnp.where(keep, h_new, h), jnp.where(keep, c_new, c)

        def step(s, carry):
            hf, cf, hb, cb = carry
            rf = pl.multiple_of(s * bp, bp)                    # fwd rows
            rb = pl.multiple_of((t_blk - 1 - s) * bp, bp)      # bwd rows
            tf = t0 + s                        # forward global time index
            tr = seq_len - 1 - tf              # backward global time index
            hf, cf = one_dir(gxf_sc[pl.ds(rf, bp), :], w_hh_f, hf, cf, tf)
            hb, cb = one_dir(gxb_sc[pl.ds(rb, bp), :], w_hh_b, hb, cb, tr)
            return hf, cf, hb, cb

        unroll = True if t_blk <= 16 else 8    # avoid vreg spills at t_blk=32
        hf, cf, hb, cb = jax.lax.fori_loop(
            0, t_blk, step,
            (hf_ref[...], cf_sc[...], hb_ref[...], cb_sc[...]),
            unroll=unroll)

        hf_ref[...] = hf
        cf_sc[...] = cf
        hb_ref[...] = hb
        cb_sc[...] = cb

    return kernel


def _bilstm_states(x2d, lens, wih_f, whh_f, b_f, wih_b, whh_b, b_b, *,
                   hidden, input_size, bp, t_blk, nb, seq_len):
    """Run both LSTM directions over the padded, stacked, time-major input.

    Returns (h_fwd, h_bwd): (Bp, H) each.
      h_fwd = hidden state at the last valid token (masked carry).
      h_bwd = backward hidden state at t=0 (reversed traversal, masked carry).
    """
    H, I, Bp = hidden, input_size, bp
    dual_x = nb > 1
    kernel = _make_kernel(H, t_blk, seq_len, Bp, dual_x)

    const2 = lambda tb: (0, 0)

    x_specs = [pl.BlockSpec((t_blk * Bp, I), lambda tb: (tb, 0))]
    args = [x2d]
    if dual_x:
        # the SAME x, blocks walked in reverse (no HBM [::-1] copy)
        x_specs.append(
            pl.BlockSpec((t_blk * Bp, I), lambda tb: (nb - 1 - tb, 0)))
        args.append(x2d)

    in_specs = x_specs + [
        pl.BlockSpec((Bp, 1), const2),            # lengths (one vreg)
        pl.BlockSpec((I, 4 * H), const2),         # W_ih fwd (BN folded)
        pl.BlockSpec((H, 4 * H), const2),         # W_hh fwd
        pl.BlockSpec((1, 4 * H), const2),         # bias fwd
        pl.BlockSpec((I, 4 * H), const2),         # W_ih bwd
        pl.BlockSpec((H, 4 * H), const2),         # W_hh bwd
        pl.BlockSpec((1, 4 * H), const2),         # bias bwd
    ]
    args += [lens, wih_f, whh_f, b_f, wih_b, whh_b, b_b]

    grid_spec = pltpu.PrefetchScalarGridSpec(
        num_scalar_prefetch=0,
        grid=(nb,),
        in_specs=in_specs,
        out_specs=[pl.BlockSpec((Bp, H), const2),   # h fwd (carry lives here)
                   pl.BlockSpec((Bp, H), const2)],  # h bwd (carry lives here)
        scratch_shapes=[
            pltpu.VMEM((Bp, H), jnp.float32),              # c fwd
            pltpu.VMEM((Bp, H), jnp.float32),              # c bwd
            pltpu.VMEM((t_blk * Bp, 4 * H), jnp.float32),  # gx fwd block
            pltpu.VMEM((t_blk * Bp, 4 * H), jnp.float32),  # gx bwd block
        ],
    )

    return pl.pallas_call(
        kernel,
        out_shape=(jax.ShapeDtypeStruct((Bp, H), jnp.float32),
                   jax.ShapeDtypeStruct((Bp, H), jnp.float32)),
        grid_spec=grid_spec,
        compiler_params=pltpu.CompilerParams(
            dimension_semantics=("arbitrary",)),   # time recurrence: sequential
    )(*args)


def aggregation_forward(q, a, q_mask, a_mask, params):
    """Aggregation.forward: (B, Tq, I), (B, Ta, I), masks -> (B, 4H)."""
    B, Tq, I = q.shape
    _, Ta, _ = a.shape
    H = params["whh_f"].shape[0]

    # ---- fold inference BatchNorm into W_ih^T / bias, reorder gate columns
    # from PyTorch [i, f, g, o] to [i, f, o, g] (grouped sigmoids) -----------
    scale = params["bn_gamma"] / jnp.sqrt(params["bn_var"] + 1e-5)   # (I,)
    shift = params["bn_beta"] - params["bn_mean"] * scale            # (I,)

    def reorder(m):      # [i, f, g, o] -> [i, f, o, g] along the last axis
        return jnp.concatenate(
            [m[..., 0:H], m[..., H:2 * H], m[..., 3 * H:4 * H],
             m[..., 2 * H:3 * H]], axis=-1)

    def prep(wih, whh, b):
        bias = b[0] + shift @ wih                 # (4H,)  b_ih+b_hh + BN shift
        wih = wih * scale[:, None]                # BN scale folded into W_ih^T
        return (reorder(wih).astype(jnp.bfloat16),
                reorder(whh).astype(jnp.bfloat16),
                reorder(bias)[None, :].astype(jnp.float32))

    wih_f, whh_f, b_f = prep(params["wih_f"], params["whh_f"], params["b_f"])
    wih_b, whh_b, b_b = prep(params["wih_b"], params["whh_b"], params["b_b"])
    # TODO(synk): dropout_p is ignored (eval-mode forward; dropout is identity).

    # ---- stack q and a on batch (shared LSTM), pad time and batch ----------
    T0 = max(Tq, Ta)
    t_blk = min(_round_up(T0, 8), 32)
    T_pad = _round_up(T0, t_blk)
    nb = T_pad // t_blk

    def pad_time(x):
        return jnp.pad(x.astype(jnp.float32),
                       ((0, 0), (0, T_pad - x.shape[1]), (0, 0)))

    x = jnp.concatenate([pad_time(q), pad_time(a)], axis=0)      # (2B, T_pad, I)
    # TODO(synk): mask is treated as right-padded (length-style), matching
    # PyTorch packed-sequence semantics; arbitrary mask patterns differ.
    lens = jnp.concatenate([jnp.sum(q_mask.astype(jnp.float32), axis=1),
                            jnp.sum(a_mask.astype(jnp.float32), axis=1)],
                           axis=0)                               # (2B,)

    Bp = _round_up(2 * B, 8)                      # sublane-full stacked batch
    x = jnp.pad(x, ((0, Bp - 2 * B), (0, 0), (0, 0)))
    lens = jnp.pad(lens, (0, Bp - 2 * B)).astype(jnp.int32)[:, None]   # (Bp,1)

    # time-major, flattened to 2D (T_pad*Bp, I); bf16 MXU operands
    x2d = (jnp.transpose(x, (1, 0, 2))
           .reshape(T_pad * Bp, I)
           .astype(jnp.bfloat16))

    h_fwd, h_bwd = _bilstm_states(x2d, lens, wih_f, whh_f, b_f,
                                  wih_b, whh_b, b_b,
                                  hidden=H, input_size=I, bp=Bp,
                                  t_blk=t_blk, nb=nb, seq_len=T_pad)

    q_final_state = h_fwd[:B]
    a_final_state = h_fwd[B:2 * B]
    q_init_state = h_bwd[:B]
    a_init_state = h_bwd[B:2 * B]
    return jnp.concatenate(
        [q_final_state, q_init_state, a_final_state, a_init_state], axis=1)


def init_params(key, perspective_num, hidden_size):
    I = perspective_num * 8
    H = hidden_size
    k = 1.0 / jnp.sqrt(jnp.float32(H))
    keys = jax.random.split(key, 8)

    def u(kk, shape):
        return jax.random.uniform(kk, shape, jnp.float32, minval=-k, maxval=k)

    return {
        # weights stored pre-transposed, PyTorch gate order [i, f, g, o];
        # b_* is b_ih + b_hh pre-summed.
        "wih_f": u(keys[0], (I, 4 * H)),
        "whh_f": u(keys[1], (H, 4 * H)),
        "b_f":   u(keys[2], (1, 4 * H)),
        "wih_b": u(keys[3], (I, 4 * H)),
        "whh_b": u(keys[4], (H, 4 * H)),
        "b_b":   u(keys[5], (1, 4 * H)),
        # BatchNorm (inference): running stats; folded into W_ih^T at call time
        "bn_gamma": jnp.ones((I,), jnp.float32),
        "bn_beta":  jnp.zeros((I,), jnp.float32),
        "bn_mean":  jnp.zeros((I,), jnp.float32),
        "bn_var":   jnp.ones((I,), jnp.float32),
    }


if __name__ == "__main__":
    perspective_num = 4
    hidden_size = 32
    batch = 2
    q_len = 8
    a_len = 8
    feat = perspective_num * 8          # 32

    key = jax.random.PRNGKey(0)
    kq, ka, kp = jax.random.split(key, 3)

    q = jax.random.normal(kq, (batch, q_len, feat), jnp.float32)
    a = jax.random.normal(ka, (batch, a_len, feat), jnp.float32)

    q_lengths = jnp.array([8, 5], jnp.int32)
    a_lengths = jnp.array([6, 8], jnp.int32)
    q_mask = (jnp.arange(q_len)[None, :] < q_lengths[:, None]).astype(jnp.float32)
    a_mask = (jnp.arange(a_len)[None, :] < a_lengths[:, None]).astype(jnp.float32)

    params = init_params(kp, perspective_num, hidden_size)

    out = aggregation_forward(q, a, q_mask, a_mask, params)
    out = jax.block_until_ready(out)
    assert out.shape == (batch, hidden_size * 4), out.shape
    print("KERNEL_OK")
</pallas_src>

<mosaic_0001>
module attributes {stable_mosaic.version = 11 : i64} {
  func.func @kernel(%arg0: i32, %arg1: memref<64x32xbf16, #tpu.memory_space<vmem>>, %arg2: memref<8x1xi32, #tpu.memory_space<vmem>>, %arg3: memref<32x128xbf16, #tpu.memory_space<vmem>>, %arg4: memref<32x128xbf16, #tpu.memory_space<vmem>>, %arg5: memref<1x128xf32, #tpu.memory_space<vmem>>, %arg6: memref<32x128xbf16, #tpu.memory_space<vmem>>, %arg7: memref<32x128xbf16, #tpu.memory_space<vmem>>, %arg8: memref<1x128xf32, #tpu.memory_space<vmem>>, %arg9: memref<8x32xf32, #tpu.memory_space<vmem>>, %arg10: memref<8x32xf32, #tpu.memory_space<vmem>>, %arg11: memref<8x32xf32, #tpu.memory_space<vmem>>, %arg12: memref<8x32xf32, #tpu.memory_space<vmem>>, %arg13: memref<64x128xf32, #tpu.memory_space<vmem>>, %arg14: memref<64x128xf32, #tpu.memory_space<vmem>>) attributes {dimension_semantics = [#tpu.dimension_semantics<arbitrary>], iteration_bounds = array<i64: 1>, scalar_prefetch = 0 : i64, scratch_operands = 4 : i64, tpu.core_type = #tpu.core_type<tc>, window_params = [{transform_indices = @transform_0, window_bounds = array<i64: 64, 32>}, {pipeline_mode = #tpu.pipeline_mode<synchronous>, transform_indices = @transform_1, window_bounds = array<i64: 8, 1>}, {pipeline_mode = #tpu.pipeline_mode<synchronous>, transform_indices = @transform_2, window_bounds = array<i64: 32, 128>}, {pipeline_mode = #tpu.pipeline_mode<synchronous>, transform_indices = @transform_3, window_bounds = array<i64: 32, 128>}, {pipeline_mode = #tpu.pipeline_mode<synchronous>, transform_indices = @transform_4, window_bounds = array<i64: 1, 128>}, {pipeline_mode = #tpu.pipeline_mode<synchronous>, transform_indices = @transform_5, window_bounds = array<i64: 32, 128>}, {pipeline_mode = #tpu.pipeline_mode<synchronous>, transform_indices = @transform_6, window_bounds = array<i64: 32, 128>}, {pipeline_mode = #tpu.pipeline_mode<synchronous>, transform_indices = @transform_7, window_bounds = array<i64: 1, 128>}, {pipeline_mode = #tpu.pipeline_mode<synchronous>, transform_indices = @transform_8, window_bounds = array<i64: 8, 32>}, {pipeline_mode = #tpu.pipeline_mode<synchronous>, transform_indices = @transform_9, window_bounds = array<i64: 8, 32>}]} {
    %c8_i32 = arith.constant 8 : i32
    %0 = arith.muli %arg0, %c8_i32 : i32
    %c0_i32 = arith.constant 0 : i32
    %1 = arith.cmpi eq, %arg0, %c0_i32 : i32
    %2 = arith.extui %1 : i1 to i32
    %c0_i32_0 = arith.constant 0 : i32
    %3 = arith.cmpi ne, %2, %c0_i32_0 : i32
    scf.if %3 {
      %cst_121 = arith.constant 0.000000e+00 : f32
      %549 = vector.broadcast %cst_121 : f32 to vector<8x32xf32>
      %c0_122 = arith.constant 0 : index
      %c0_123 = arith.constant 0 : index
      %550 = vector.load %arg9[%c0_122, %c0_123] : memref<8x32xf32, #tpu.memory_space<vmem>>, vector<8x32xf32>
      tpu.vector_store %arg9[%c0_122, %c0_123], %549 {strides = array<i32>} : memref<8x32xf32, #tpu.memory_space<vmem>>, vector<8x32xf32>,
      %cst_124 = arith.constant 0.000000e+00 : f32
      %551 = vector.broadcast %cst_124 : f32 to vector<8x32xf32>
      %c0_125 = arith.constant 0 : index
      %c0_126 = arith.constant 0 : index
      %552 = vector.load %arg10[%c0_125, %c0_126] : memref<8x32xf32, #tpu.memory_space<vmem>>, vector<8x32xf32>
      tpu.vector_store %arg10[%c0_125, %c0_126], %551 {strides = array<i32>} : memref<8x32xf32, #tpu.memory_space<vmem>>, vector<8x32xf32>,
      %cst_127 = arith.constant 0.000000e+00 : f32
      %553 = vector.broadcast %cst_127 : f32 to vector<8x32xf32>
      %c0_128 = arith.constant 0 : index
      %c0_129 = arith.constant 0 : index
      %554 = vector.load %arg11[%c0_128, %c0_129] : memref<8x32xf32, #tpu.memory_space<vmem>>, vector<8x32xf32>
      tpu.vector_store %arg11[%c0_128, %c0_129], %553 {strides = array<i32>} : memref<8x32xf32, #tpu.memory_space<vmem>>, vector<8x32xf32>,
      %cst_130 = arith.constant 0.000000e+00 : f32
      %555 = vector.broadcast %cst_130 : f32 to vector<8x32xf32>
      %c0_131 = arith.constant 0 : index
      %c0_132 = arith.constant 0 : index
      %556 = vector.load %arg12[%c0_131, %c0_132] : memref<8x32xf32, #tpu.memory_space<vmem>>, vector<8x32xf32>
      tpu.vector_store %arg12[%c0_131, %c0_132], %555 {strides = array<i32>} : memref<8x32xf32, #tpu.memory_space<vmem>>, vector<8x32xf32>,
    } else {
    }
    %c0 = arith.constant 0 : index
    %c0_1 = arith.constant 0 : index
    %4 = vector.load %arg1[%c0, %c0_1] : memref<64x32xbf16, #tpu.memory_space<vmem>>, vector<64x32xbf16>
    %c0_2 = arith.constant 0 : index
    %c0_3 = arith.constant 0 : index
    %5 = vector.load %arg3[%c0_2, %c0_3] : memref<32x128xbf16, #tpu.memory_space<vmem>>, vector<32x128xbf16>
    %cst = arith.constant dense<0.000000e+00> : vector<64x128xf32>
    %6 = tpu.matmul %4, %5, %cst {dimension_numbers = #tpu.dot_dimension_numbers<[1], [0], [0], [1], [0, 0, 1, 1], [], []>} : vector<64x32xbf16>, vector<32x128xbf16>, vector<64x128xf32> -> vector<64x128xf32>
    %c0_4 = arith.constant 0 : index
    %c0_5 = arith.constant 0 : index
    %7 = vector.load %arg5[%c0_4, %c0_5] : memref<1x128xf32, #tpu.memory_space<vmem>>, vector<1x128xf32>
    %8 = vector.broadcast %7 : vector<1x128xf32> to vector<64x128xf32>
    %9 = arith.addf %6, %8 : vector<64x128xf32>
    %c0_6 = arith.constant 0 : index
    %c0_7 = arith.constant 0 : index
    %10 = vector.load %arg13[%c0_6, %c0_7] : memref<64x128xf32, #tpu.memory_space<vmem>>, vector<64x128xf32>
    tpu.vector_store %arg13[%c0_6, %c0_7], %9 {strides = array<i32>} : memref<64x128xf32, #tpu.memory_space<vmem>>, vector<64x128xf32>,
    %c0_8 = arith.constant 0 : index
    %c0_9 = arith.constant 0 : index
    %11 = vector.load %arg1[%c0_8, %c0_9] : memref<64x32xbf16, #tpu.memory_space<vmem>>, vector<64x32xbf16>
    %c0_10 = arith.constant 0 : index
    %c0_11 = arith.constant 0 : index
    %12 = vector.load %arg6[%c0_10, %c0_11] : memref<32x128xbf16, #tpu.memory_space<vmem>>, vector<32x128xbf16>
    %cst_12 = arith.constant dense<0.000000e+00> : vector<64x128xf32>
    %13 = tpu.matmul %11, %12, %cst_12 {dimension_numbers = #tpu.dot_dimension_numbers<[1], [0], [0], [1], [0, 0, 1, 1], [], []>} : vector<64x32xbf16>, vector<32x128xbf16>, vector<64x128xf32> -> vector<64x128xf32>
    %c0_13 = arith.constant 0 : index
    %c0_14 = arith.constant 0 : index
    %14 = vector.load %arg8[%c0_13, %c0_14] : memref<1x128xf32, #tpu.memory_space<vmem>>, vector<1x128xf32>
    %15 = vector.broadcast %14 : vector<1x128xf32> to vector<64x128xf32>
    %16 = arith.addf %13, %15 : vector<64x128xf32>
    %c0_15 = arith.constant 0 : index
    %c0_16 = arith.constant 0 : index
    %17 = vector.load %arg14[%c0_15, %c0_16] : memref<64x128xf32, #tpu.memory_space<vmem>>, vector<64x128xf32>
    tpu.vector_store %arg14[%c0_15, %c0_16], %16 {strides = array<i32>} : memref<64x128xf32, #tpu.memory_space<vmem>>, vector<64x128xf32>,
    %c0_17 = arith.constant 0 : index
    %c0_18 = arith.constant 0 : index
    %18 = vector.load %arg2[%c0_17, %c0_18] : memref<8x1xi32, #tpu.memory_space<vmem>>, vector<8x1xi32>
    %c0_19 = arith.constant 0 : index
    %c0_20 = arith.constant 0 : index
    %19 = vector.load %arg4[%c0_19, %c0_20] : memref<32x128xbf16, #tpu.memory_space<vmem>>, vector<32x128xbf16>
    %c0_21 = arith.constant 0 : index
    %c0_22 = arith.constant 0 : index
    %20 = vector.load %arg7[%c0_21, %c0_22] : memref<32x128xbf16, #tpu.memory_space<vmem>>, vector<32x128xbf16>
    %c0_23 = arith.constant 0 : index
    %c0_24 = arith.constant 0 : index
    %21 = vector.load %arg9[%c0_23, %c0_24] : memref<8x32xf32, #tpu.memory_space<vmem>>, vector<8x32xf32>
    %c0_25 = arith.constant 0 : index
    %c0_26 = arith.constant 0 : index
    %22 = vector.load %arg11[%c0_25, %c0_26] : memref<8x32xf32, #tpu.memory_space<vmem>>, vector<8x32xf32>
    %c0_27 = arith.constant 0 : index
    %c0_28 = arith.constant 0 : index
    %23 = vector.load %arg10[%c0_27, %c0_28] : memref<8x32xf32, #tpu.memory_space<vmem>>, vector<8x32xf32>
    %c0_29 = arith.constant 0 : index
    %c0_30 = arith.constant 0 : index
    %24 = vector.load %arg12[%c0_29, %c0_30] : memref<8x32xf32, #tpu.memory_space<vmem>>, vector<8x32xf32>
    %c0_i32_31 = arith.constant 0 : i32
    %c8_i32_32 = arith.constant 8 : i32
    %25 = arith.muli %c0_i32_31, %c8_i32_32 : i32
    %26 = tpu.assume_multiple %25, 8 : i32
    %c7_i32 = arith.constant 7 : i32
    %27 = arith.subi %c7_i32, %c0_i32_31 : i32
    %c8_i32_33 = arith.constant 8 : i32
    %28 = arith.muli %27, %c8_i32_33 : i32
    %29 = tpu.assume_multiple %28, 8 : i32
    %30 = arith.addi %0, %c0_i32_31 : i32
    %c7_i32_34 = arith.constant 7 : i32
    %31 = arith.subi %c7_i32_34, %30 : i32
    %32 = arith.index_cast %26 : i32 to index
    %c0_35 = arith.constant 0 : index
    %33 = vector.load %arg13[%32, %c0_35] : memref<64x128xf32, #tpu.memory_space<vmem>>, vector<8x128xf32>
    %34 = arith.truncf %21 : vector<8x32xf32> to vector<8x32xbf16>
    %cst_36 = arith.constant dense<0.000000e+00> : vector<8x128xf32>
    %35 = tpu.matmul %34, %19, %cst_36 {dimension_numbers = #tpu.dot_dimension_numbers<[1], [0], [0], [1], [0, 0, 1, 1], [], []>} : vector<8x32xbf16>, vector<32x128xbf16>, vector<8x128xf32> -> vector<8x128xf32>
    %36 = arith.addf %33, %35 : vector<8x128xf32>
    %37 = vector.extract_strided_slice %36 {offsets = [0, 0], sizes = [8, 96], strides = [1, 1]} : vector<8x128xf32> to vector<8x96xf32>
    %38 = arith.negf %37 : vector<8x96xf32>
    %39 = math.exp %38 : vector<8x96xf32>
    %cst_37 = arith.constant 1.000000e+00 : f32
    %40 = vector.broadcast %cst_37 : f32 to vector<8x96xf32>
    %41 = arith.addf %40, %39 : vector<8x96xf32>
    %42 = arith.divf %40, %41 : vector<8x96xf32>
    %43 = vector.extract_strided_slice %42 {offsets = [0, 0], sizes = [8, 32], strides = [1, 1]} : vector<8x96xf32> to vector<8x32xf32>
    %44 = vector.extract_strided_slice %42 {offsets = [0, 32], sizes = [8, 32], strides = [1, 1]} : vector<8x96xf32> to vector<8x32xf32>
    %45 = vector.extract_strided_slice %42 {offsets = [0, 64], sizes = [8, 32], strides = [1, 1]} : vector<8x96xf32> to vector<8x32xf32>
    %46 = vector.extract_strided_slice %36 {offsets = [0, 96], sizes = [8, 32], strides = [1, 1]} : vector<8x128xf32> to vector<8x32xf32>
    %47 = math.tanh %46 : vector<8x32xf32>
    %48 = arith.mulf %44, %22 : vector<8x32xf32>
    %49 = arith.mulf %43, %47 : vector<8x32xf32>
    %50 = arith.addf %48, %49 : vector<8x32xf32>
    %51 = math.tanh %50 : vector<8x32xf32>
    %52 = arith.mulf %45, %51 : vector<8x32xf32>
    %53 = vector.broadcast %30 : i32 to vector<8x1xi32>
    %54 = arith.cmpi slt, %53, %18 : vector<8x1xi32>
    %55 = vector.shape_cast %54 : vector<8x1xi1> to vector<8x1xi1>
    %56 = vector.broadcast %55 : vector<8x1xi1> to vector<8x32xi1>
    %57 = arith.select %56, %52, %21 : vector<8x32xi1>, vector<8x32xf32>
    %58 = vector.shape_cast %54 : vector<8x1xi1> to vector<8x1xi1>
    %59 = vector.broadcast %58 : vector<8x1xi1> to vector<8x32xi1>
    %60 = arith.select %59, %50, %22 : vector<8x32xi1>, vector<8x32xf32>
    %61 = arith.index_cast %29 : i32 to index
    %c0_38 = arith.constant 0 : index
    %62 = vector.load %arg14[%61, %c0_38] : memref<64x128xf32, #tpu.memory_space<vmem>>, vector<8x128xf32>
    %63 = arith.truncf %23 : vector<8x32xf32> to vector<8x32xbf16>
    %cst_39 = arith.constant dense<0.000000e+00> : vector<8x128xf32>
    %64 = tpu.matmul %63, %20, %cst_39 {dimension_numbers = #tpu.dot_dimension_numbers<[1], [0], [0], [1], [0, 0, 1, 1], [], []>} : vector<8x32xbf16>, vector<32x128xbf16>, vector<8x128xf32> -> vector<8x128xf32>
    %65 = arith.addf %62, %64 : vector<8x128xf32>
    %66 = vector.extract_strided_slice %65 {offsets = [0, 0], sizes = [8, 96], strides = [1, 1]} : vector<8x128xf32> to vector<8x96xf32>
    %67 = arith.negf %66 : vector<8x96xf32>
    %68 = math.exp %67 : vector<8x96xf32>
    %cst_40 = arith.constant 1.000000e+00 : f32
    %69 = vector.broadcast %cst_40 : f32 to vector<8x96xf32>
    %70 = arith.addf %69, %68 : vector<8x96xf32>
    %71 = arith.divf %69, %70 : vector<8x96xf32>
    %72 = vector.extract_strided_slice %71 {offsets = [0, 0], sizes = [8, 32], strides = [1, 1]} : vector<8x96xf32> to vector<8x32xf32>
    %73 = vector.extract_strided_slice %71 {offsets = [0, 32], sizes = [8, 32], strides = [1, 1]} : vector<8x96xf32> to vector<8x32xf32>
    %74 = vector.extract_strided_slice %71 {offsets = [0, 64], sizes = [8, 32], strides = [1, 1]} : vector<8x96xf32> to vector<8x32xf32>
    %75 = vector.extract_strided_slice %65 {offsets = [0, 96], sizes = [8, 32], strides = [1, 1]} : vector<8x128xf32> to vector<8x32xf32>
    %76 = math.tanh %75 : vector<8x32xf32>
    %77 = arith.mulf %73, %24 : vector<8x32xf32>
    %78 = arith.mulf %72, %76 : vector<8x32xf32>
    %79 = arith.addf %77, %78 : vector<8x32xf32>
    %80 = math.tanh %79 : vector<8x32xf32>
    %81 = arith.mulf %74, %80 : vector<8x32xf32>
    %82 = vector.broadcast %31 : i32 to vector<8x1xi32>
    %83 = arith.cmpi slt, %82, %18 : vector<8x1xi32>
    %84 = vector.shape_cast %83 : vector<8x1xi1> to vector<8x1xi1>
    %85 = vector.broadcast %84 : vector<8x1xi1> to vector<8x32xi1>
    %86 = arith.select %85, %81, %23 : vector<8x32xi1>, vector<8x32xf32>
    %87 = vector.shape_cast %83 : vector<8x1xi1> to vector<8x1xi1>
    %88 = vector.broadcast %87 : vector<8x1xi1> to vector<8x32xi1>
    %89 = arith.select %88, %79, %24 : vector<8x32xi1>, vector<8x32xf32>
    %c1_i32 = arith.constant 1 : i32
    %c8_i32_41 = arith.constant 8 : i32
    %90 = arith.muli %c1_i32, %c8_i32_41 : i32
    %91 = tpu.assume_multiple %90, 8 : i32
    %c7_i32_42 = arith.constant 7 : i32
    %92 = arith.subi %c7_i32_42, %c1_i32 : i32
    %c8_i32_43 = arith.constant 8 : i32
    %93 = arith.muli %92, %c8_i32_43 : i32
    %94 = tpu.assume_multiple %93, 8 : i32
    %95 = arith.addi %0, %c1_i32 : i32
    %c7_i32_44 = arith.constant 7 : i32
    %96 = arith.subi %c7_i32_44, %95 : i32
    %97 = arith.index_cast %91 : i32 to index
    %c0_45 = arith.constant 0 : index
    %98 = vector.load %arg13[%97, %c0_45] : memref<64x128xf32, #tpu.memory_space<vmem>>, vector<8x128xf32>
    %99 = arith.truncf %57 : vector<8x32xf32> to vector<8x32xbf16>
    %cst_46 = arith.constant dense<0.000000e+00> : vector<8x128xf32>
    %100 = tpu.matmul %99, %19, %cst_46 {dimension_numbers = #tpu.dot_dimension_numbers<[1], [0], [0], [1], [0, 0, 1, 1], [], []>} : vector<8x32xbf16>, vector<32x128xbf16>, vector<8x128xf32> -> vector<8x128xf32>
    %101 = arith.addf %98, %100 : vector<8x128xf32>
    %102 = vector.extract_strided_slice %101 {offsets = [0, 0], sizes = [8, 96], strides = [1, 1]} : vector<8x128xf32> to vector<8x96xf32>
    %103 = arith.negf %102 : vector<8x96xf32>
    %104 = math.exp %103 : vector<8x96xf32>
    %cst_47 = arith.constant 1.000000e+00 : f32
    %105 = vector.broadcast %cst_47 : f32 to vector<8x96xf32>
    %106 = arith.addf %105, %104 : vector<8x96xf32>
    %107 = arith.divf %105, %106 : vector<8x96xf32>
    %108 = vector.extract_strided_slice %107 {offsets = [0, 0], sizes = [8, 32], strides = [1, 1]} : vector<8x96xf32> to vector<8x32xf32>
    %109 = vector.extract_strided_slice %107 {offsets = [0, 32], sizes = [8, 32], strides = [1, 1]} : vector<8x96xf32> to vector<8x32xf32>
    %110 = vector.extract_strided_slice %107 {offsets = [0, 64], sizes = [8, 32], strides = [1, 1]} : vector<8x96xf32> to vector<8x32xf32>
    %111 = vector.extract_strided_slice %101 {offsets = [0, 96], sizes = [8, 32], strides = [1, 1]} : vector<8x128xf32> to vector<8x32xf32>
    %112 = math.tanh %111 : vector<8x32xf32>
    %113 = arith.mulf %109, %60 : vector<8x32xf32>
    %114 = arith.mulf %108, %112 : vector<8x32xf32>
    %115 = arith.addf %113, %114 : vector<8x32xf32>
    %116 = math.tanh %115 : vector<8x32xf32>
    %117 = arith.mulf %110, %116 : vector<8x32xf32>
    %118 = vector.broadcast %95 : i32 to vector<8x1xi32>
    %119 = arith.cmpi slt, %118, %18 : vector<8x1xi32>
    %120 = vector.shape_cast %119 : vector<8x1xi1> to vector<8x1xi1>
    %121 = vector.broadcast %120 : vector<8x1xi1> to vector<8x32xi1>
    %122 = arith.select %121, %117, %57 : vector<8x32xi1>, vector<8x32xf32>
    %123 = vector.shape_cast %119 : vector<8x1xi1> to vector<8x1xi1>
    %124 = vector.broadcast %123 : vector<8x1xi1> to vector<8x32xi1>
    %125 = arith.select %124, %115, %60 : vector<8x32xi1>, vector<8x32xf32>
    %126 = arith.index_cast %94 : i32 to index
    %c0_48 = arith.constant 0 : index
    %127 = vector.load %arg14[%126, %c0_48] : memref<64x128xf32, #tpu.memory_space<vmem>>, vector<8x128xf32>
    %128 = arith.truncf %86 : vector<8x32xf32> to vector<8x32xbf16>
    %cst_49 = arith.constant dense<0.000000e+00> : vector<8x128xf32>
    %129 = tpu.matmul %128, %20, %cst_49 {dimension_numbers = #tpu.dot_dimension_numbers<[1], [0], [0], [1], [0, 0, 1, 1], [], []>} : vector<8x32xbf16>, vector<32x128xbf16>, vector<8x128xf32> -> vector<8x128xf32>
    %130 = arith.addf %127, %129 : vector<8x128xf32>
    %131 = vector.extract_strided_slice %130 {offsets = [0, 0], sizes = [8, 96], strides = [1, 1]} : vector<8x128xf32> to vector<8x96xf32>
    %132 = arith.negf %131 : vector<8x96xf32>
    %133 = math.exp %132 : vector<8x96xf32>
    %cst_50 = arith.constant 1.000000e+00 : f32
    %134 = vector.broadcast %cst_50 : f32 to vector<8x96xf32>
    %135 = arith.addf %134, %133 : vector<8x96xf32>
    %136 = arith.divf %134, %135 : vector<8x96xf32>
    %137 = vector.extract_strided_slice %136 {offsets = [0, 0], sizes = [8, 32], strides = [1, 1]} : vector<8x96xf32> to vector<8x32xf32>
    %138 = vector.extract_strided_slice %136 {offsets = [0, 32], sizes = [8, 32], strides = [1, 1]} : vector<8x96xf32> to vector<8x32xf32>
    %139 = vector.extract_strided_slice %136 {offsets = [0, 64], sizes = [8, 32], strides = [1, 1]} : vector<8x96xf32> to vector<8x32xf32>
    %140 = vector.extract_strided_slice %130 {offsets = [0, 96], sizes = [8, 32], strides = [1, 1]} : vector<8x128xf32> to vector<8x32xf32>
    %141 = math.tanh %140 : vector<8x32xf32>
    %142 = arith.mulf %138, %89 : vector<8x32xf32>
    %143 = arith.mulf %137, %141 : vector<8x32xf32>
    %144 = arith.addf %142, %143 : vector<8x32xf32>
    %145 = math.tanh %144 : vector<8x32xf32>
    %146 = arith.mulf %139, %145 : vector<8x32xf32>
    %147 = vector.broadcast %96 : i32 to vector<8x1xi32>
    %148 = arith.cmpi slt, %147, %18 : vector<8x1xi32>
    %149 = vector.shape_cast %148 : vector<8x1xi1> to vector<8x1xi1>
    %150 = vector.broadcast %149 : vector<8x1xi1> to vector<8x32xi1>
    %151 = arith.select %150, %146, %86 : vector<8x32xi1>, vector<8x32xf32>
    %152 = vector.shape_cast %148 : vector<8x1xi1> to vector<8x1xi1>
    %153 = vector.broadcast %152 : vector<8x1xi1> to vector<8x32xi1>
    %154 = arith.select %153, %144, %89 : vector<8x32xi1>, vector<8x32xf32>
    %c2_i32 = arith.constant 2 : i32
    %c8_i32_51 = arith.constant 8 : i32
    %155 = arith.muli %c2_i32, %c8_i32_51 : i32
    %156 = tpu.assume_multiple %155, 8 : i32
    %c7_i32_52 = arith.constant 7 : i32
    %157 = arith.subi %c7_i32_52, %c2_i32 : i32
    %c8_i32_53 = arith.constant 8 : i32
    %158 = arith.muli %157, %c8_i32_53 : i32
    %159 = tpu.assume_multiple %158, 8 : i32
    %160 = arith.addi %0, %c2_i32 : i32
    %c7_i32_54 = arith.constant 7 : i32
    %161 = arith.subi %c7_i32_54, %160 : i32
    %162 = arith.index_cast %156 : i32 to index
    %c0_55 = arith.constant 0 : index
    %163 = vector.load %arg13[%162, %c0_55] : memref<64x128xf32, #tpu.memory_space<vmem>>, vector<8x128xf32>
    %164 = arith.truncf %122 : vector<8x32xf32> to vector<8x32xbf16>
    %cst_56 = arith.constant dense<0.000000e+00> : vector<8x128xf32>
    %165 = tpu.matmul %164, %19, %cst_56 {dimension_numbers = #tpu.dot_dimension_numbers<[1], [0], [0], [1], [0, 0, 1, 1], [], []>} : vector<8x32xbf16>, vector<32x128xbf16>, vector<8x128xf32> -> vector<8x128xf32>
    %166 = arith.addf %163, %165 : vector<8x128xf32>
    %167 = vector.extract_strided_slice %166 {offsets = [0, 0], sizes = [8, 96], strides = [1, 1]} : vector<8x128xf32> to vector<8x96xf32>
    %168 = arith.negf %167 : vector<8x96xf32>
    %169 = math.exp %168 : vector<8x96xf32>
    %cst_57 = arith.constant 1.000000e+00 : f32
    %170 = vector.broadcast %cst_57 : f32 to vector<8x96xf32>
    %171 = arith.addf %170, %169 : vector<8x96xf32>
    %172 = arith.divf %170, %171 : vector<8x96xf32>
    %173 = vector.extract_strided_slice %172 {offsets = [0, 0], sizes = [8, 32], strides = [1, 1]} : vector<8x96xf32> to vector<8x32xf32>
    %174 = vector.extract_strided_slice %172 {offsets = [0, 32], sizes = [8, 32], strides = [1, 1]} : vector<8x96xf32> to vector<8x32xf32>
    %175 = vector.extract_strided_slice %172 {offsets = [0, 64], sizes = [8, 32], strides = [1, 1]} : vector<8x96xf32> to vector<8x32xf32>
    %176 = vector.extract_strided_slice %166 {offsets = [0, 96], sizes = [8, 32], strides = [1, 1]} : vector<8x128xf32> to vector<8x32xf32>
    %177 = math.tanh %176 : vector<8x32xf32>
    %178 = arith.mulf %174, %125 : vector<8x32xf32>
    %179 = arith.mulf %173, %177 : vector<8x32xf32>
    %180 = arith.addf %178, %179 : vector<8x32xf32>
    %181 = math.tanh %180 : vector<8x32xf32>
    %182 = arith.mulf %175, %181 : vector<8x32xf32>
    %183 = vector.broadcast %160 : i32 to vector<8x1xi32>
    %184 = arith.cmpi slt, %183, %18 : vector<8x1xi32>
    %185 = vector.shape_cast %184 : vector<8x1xi1> to vector<8x1xi1>
    %186 = vector.broadcast %185 : vector<8x1xi1> to vector<8x32xi1>
    %187 = arith.select %186, %182, %122 : vector<8x32xi1>, vector<8x32xf32>
    %188 = vector.shape_cast %184 : vector<8x1xi1> to vector<8x1xi1>
    %189 = vector.broadcast %188 : vector<8x1xi1> to vector<8x32xi1>
    %190 = arith.select %189, %180, %125 : vector<8x32xi1>, vector<8x32xf32>
    %191 = arith.index_cast %159 : i32 to index
    %c0_58 = arith.constant 0 : index
    %192 = vector.load %arg14[%191, %c0_58] : memref<64x128xf32, #tpu.memory_space<vmem>>, vector<8x128xf32>
    %193 = arith.truncf %151 : vector<8x32xf32> to vector<8x32xbf16>
    %cst_59 = arith.constant dense<0.000000e+00> : vector<8x128xf32>
    %194 = tpu.matmul %193, %20, %cst_59 {dimension_numbers = #tpu.dot_dimension_numbers<[1], [0], [0], [1], [0, 0, 1, 1], [], []>} : vector<8x32xbf16>, vector<32x128xbf16>, vector<8x128xf32> -> vector<8x128xf32>
    %195 = arith.addf %192, %194 : vector<8x128xf32>
    %196 = vector.extract_strided_slice %195 {offsets = [0, 0], sizes = [8, 96], strides = [1, 1]} : vector<8x128xf32> to vector<8x96xf32>
    %197 = arith.negf %196 : vector<8x96xf32>
    %198 = math.exp %197 : vector<8x96xf32>
    %cst_60 = arith.constant 1.000000e+00 : f32
    %199 = vector.broadcast %cst_60 : f32 to vector<8x96xf32>
    %200 = arith.addf %199, %198 : vector<8x96xf32>
    %201 = arith.divf %199, %200 : vector<8x96xf32>
    %202 = vector.extract_strided_slice %201 {offsets = [0, 0], sizes = [8, 32], strides = [1, 1]} : vector<8x96xf32> to vector<8x32xf32>
    %203 = vector.extract_strided_slice %201 {offsets = [0, 32], sizes = [8, 32], strides = [1, 1]} : vector<8x96xf32> to vector<8x32xf32>
    %204 = vector.extract_strided_slice %201 {offsets = [0, 64], sizes = [8, 32], strides = [1, 1]} : vector<8x96xf32> to vector<8x32xf32>
    %205 = vector.extract_strided_slice %195 {offsets = [0, 96], sizes = [8, 32], strides = [1, 1]} : vector<8x128xf32> to vector<8x32xf32>
    %206 = math.tanh %205 : vector<8x32xf32>
    %207 = arith.mulf %203, %154 : vector<8x32xf32>
    %208 = arith.mulf %202, %206 : vector<8x32xf32>
    %209 = arith.addf %207, %208 : vector<8x32xf32>
    %210 = math.tanh %209 : vector<8x32xf32>
    %211 = arith.mulf %204, %210 : vector<8x32xf32>
    %212 = vector.broadcast %161 : i32 to vector<8x1xi32>
    %213 = arith.cmpi slt, %212, %18 : vector<8x1xi32>
    %214 = vector.shape_cast %213 : vector<8x1xi1> to vector<8x1xi1>
    %215 = vector.broadcast %214 : vector<8x1xi1> to vector<8x32xi1>
    %216 = arith.select %215, %211, %151 : vector<8x32xi1>, vector<8x32xf32>
    %217 = vector.shape_cast %213 : vector<8x1xi1> to vector<8x1xi1>
    %218 = vector.broadcast %217 : vector<8x1xi1> to vector<8x32xi1>
    %219 = arith.select %218, %209, %154 : vector<8x32xi1>, vector<8x32xf32>
    %c3_i32 = arith.constant 3 : i32
    %c8_i32_61 = arith.constant 8 : i32
    %220 = arith.muli %c3_i32, %c8_i32_61 : i32
    %221 = tpu.assume_multiple %220, 8 : i32
    %c7_i32_62 = arith.constant 7 : i32
    %222 = arith.subi %c7_i32_62, %c3_i32 : i32
    %c8_i32_63 = arith.constant 8 : i32
    %223 = arith.muli %222, %c8_i32_63 : i32
    %224 = tpu.assume_multiple %223, 8 : i32
    %225 = arith.addi %0, %c3_i32 : i32
    %c7_i32_64 = arith.constant 7 : i32
    %226 = arith.subi %c7_i32_64, %225 : i32
    %227 = arith.index_cast %221 : i32 to index
    %c0_65 = arith.constant 0 : index
    %228 = vector.load %arg13[%227, %c0_65] : memref<64x128xf32, #tpu.memory_space<vmem>>, vector<8x128xf32>
    %229 = arith.truncf %187 : vector<8x32xf32> to vector<8x32xbf16>
    %cst_66 = arith.constant dense<0.000000e+00> : vector<8x128xf32>
    %230 = tpu.matmul %229, %19, %cst_66 {dimension_numbers = #tpu.dot_dimension_numbers<[1], [0], [0], [1], [0, 0, 1, 1], [], []>} : vector<8x32xbf16>, vector<32x128xbf16>, vector<8x128xf32> -> vector<8x128xf32>
    %231 = arith.addf %228, %230 : vector<8x128xf32>
    %232 = vector.extract_strided_slice %231 {offsets = [0, 0], sizes = [8, 96], strides = [1, 1]} : vector<8x128xf32> to vector<8x96xf32>
    %233 = arith.negf %232 : vector<8x96xf32>
    %234 = math.exp %233 : vector<8x96xf32>
    %cst_67 = arith.constant 1.000000e+00 : f32
    %235 = vector.broadcast %cst_67 : f32 to vector<8x96xf32>
    %236 = arith.addf %235, %234 : vector<8x96xf32>
    %237 = arith.divf %235, %236 : vector<8x96xf32>
    %238 = vector.extract_strided_slice %237 {offsets = [0, 0], sizes = [8, 32], strides = [1, 1]} : vector<8x96xf32> to vector<8x32xf32>
    %239 = vector.extract_strided_slice %237 {offsets = [0, 32], sizes = [8, 32], strides = [1, 1]} : vector<8x96xf32> to vector<8x32xf32>
    %240 = vector.extract_strided_slice %237 {offsets = [0, 64], sizes = [8, 32], strides = [1, 1]} : vector<8x96xf32> to vector<8x32xf32>
    %241 = vector.extract_strided_slice %231 {offsets = [0, 96], sizes = [8, 32], strides = [1, 1]} : vector<8x128xf32> to vector<8x32xf32>
    %242 = math.tanh %241 : vector<8x32xf32>
    %243 = arith.mulf %239, %190 : vector<8x32xf32>
    %244 = arith.mulf %238, %242 : vector<8x32xf32>
    %245 = arith.addf %243, %244 : vector<8x32xf32>
    %246 = math.tanh %245 : vector<8x32xf32>
    %247 = arith.mulf %240, %246 : vector<8x32xf32>
    %248 = vector.broadcast %225 : i32 to vector<8x1xi32>
    %249 = arith.cmpi slt, %248, %18 : vector<8x1xi32>
    %250 = vector.shape_cast %249 : vector<8x1xi1> to vector<8x1xi1>
    %251 = vector.broadcast %250 : vector<8x1xi1> to vector<8x32xi1>
    %252 = arith.select %251, %247, %187 : vector<8x32xi1>, vector<8x32xf32>
    %253 = vector.shape_cast %249 : vector<8x1xi1> to vector<8x1xi1>
    %254 = vector.broadcast %253 : vector<8x1xi1> to vector<8x32xi1>
    %255 = arith.select %254, %245, %190 : vector<8x32xi1>, vector<8x32xf32>
    %256 = arith.index_cast %224 : i32 to index
    %c0_68 = arith.constant 0 : index
    %257 = vector.load %arg14[%256, %c0_68] : memref<64x128xf32, #tpu.memory_space<vmem>>, vector<8x128xf32>
    %258 = arith.truncf %216 : vector<8x32xf32> to vector<8x32xbf16>
    %cst_69 = arith.constant dense<0.000000e+00> : vector<8x128xf32>
    %259 = tpu.matmul %258, %20, %cst_69 {dimension_numbers = #tpu.dot_dimension_numbers<[1], [0], [0], [1], [0, 0, 1, 1], [], []>} : vector<8x32xbf16>, vector<32x128xbf16>, vector<8x128xf32> -> vector<8x128xf32>
    %260 = arith.addf %257, %259 : vector<8x128xf32>
    %261 = vector.extract_strided_slice %260 {offsets = [0, 0], sizes = [8, 96], strides = [1, 1]} : vector<8x128xf32> to vector<8x96xf32>
    %262 = arith.negf %261 : vector<8x96xf32>
    %263 = math.exp %262 : vector<8x96xf32>
    %cst_70 = arith.constant 1.000000e+00 : f32
    %264 = vector.broadcast %cst_70 : f32 to vector<8x96xf32>
    %265 = arith.addf %264, %263 : vector<8x96xf32>
    %266 = arith.divf %264, %265 : vector<8x96xf32>
    %267 = vector.extract_strided_slice %266 {offsets = [0, 0], sizes = [8, 32], strides = [1, 1]} : vector<8x96xf32> to vector<8x32xf32>
    %268 = vector.extract_strided_slice %266 {offsets = [0, 32], sizes = [8, 32], strides = [1, 1]} : vector<8x96xf32> to vector<8x32xf32>
    %269 = vector.extract_strided_slice %266 {offsets = [0, 64], sizes = [8, 32], strides = [1, 1]} : vector<8x96xf32> to vector<8x32xf32>
    %270 = vector.extract_strided_slice %260 {offsets = [0, 96], sizes = [8, 32], strides = [1, 1]} : vector<8x128xf32> to vector<8x32xf32>
    %271 = math.tanh %270 : vector<8x32xf32>
    %272 = arith.mulf %268, %219 : vector<8x32xf32>
    %273 = arith.mulf %267, %271 : vector<8x32xf32>
    %274 = arith.addf %272, %273 : vector<8x32xf32>
    %275 = math.tanh %274 : vector<8x32xf32>
    %276 = arith.mulf %269, %275 : vector<8x32xf32>
    %277 = vector.broadcast %226 : i32 to vector<8x1xi32>
    %278 = arith.cmpi slt, %277, %18 : vector<8x1xi32>
    %279 = vector.shape_cast %278 : vector<8x1xi1> to vector<8x1xi1>
    %280 = vector.broadcast %279 : vector<8x1xi1> to vector<8x32xi1>
    %281 = arith.select %280, %276, %216 : vector<8x32xi1>, vector<8x32xf32>
    %282 = vector.shape_cast %278 : vector<8x1xi1> to vector<8x1xi1>
    %283 = vector.broadcast %282 : vector<8x1xi1> to vector<8x32xi1>
    %284 = arith.select %283, %274, %219 : vector<8x32xi1>, vector<8x32xf32>
    %c4_i32 = arith.constant 4 : i32
    %c8_i32_71 = arith.constant 8 : i32
    %285 = arith.muli %c4_i32, %c8_i32_71 : i32
    %286 = tpu.assume_multiple %285, 8 : i32
    %c7_i32_72 = arith.constant 7 : i32
    %287 = arith.subi %c7_i32_72, %c4_i32 : i32
    %c8_i32_73 = arith.constant 8 : i32
    %288 = arith.muli %287, %c8_i32_73 : i32
    %289 = tpu.assume_multiple %288, 8 : i32
    %290 = arith.addi %0, %c4_i32 : i32
    %c7_i32_74 = arith.constant 7 : i32
    %291 = arith.subi %c7_i32_74, %290 : i32
    %292 = arith.index_cast %286 : i32 to index
    %c0_75 = arith.constant 0 : index
    %293 = vector.load %arg13[%292, %c0_75] : memref<64x128xf32, #tpu.memory_space<vmem>>, vector<8x128xf32>
    %294 = arith.truncf %252 : vector<8x32xf32> to vector<8x32xbf16>
    %cst_76 = arith.constant dense<0.000000e+00> : vector<8x128xf32>
    %295 = tpu.matmul %294, %19, %cst_76 {dimension_numbers = #tpu.dot_dimension_numbers<[1], [0], [0], [1], [0, 0, 1, 1], [], []>} : vector<8x32xbf16>, vector<32x128xbf16>, vector<8x128xf32> -> vector<8x128xf32>
    %296 = arith.addf %293, %295 : vector<8x128xf32>
    %297 = vector.extract_strided_slice %296 {offsets = [0, 0], sizes = [8, 96], strides = [1, 1]} : vector<8x128xf32> to vector<8x96xf32>
    %298 = arith.negf %297 : vector<8x96xf32>
    %299 = math.exp %298 : vector<8x96xf32>
    %cst_77 = arith.constant 1.000000e+00 : f32
    %300 = vector.broadcast %cst_77 : f32 to vector<8x96xf32>
    %301 = arith.addf %300, %299 : vector<8x96xf32>
    %302 = arith.divf %300, %301 : vector<8x96xf32>
    %303 = vector.extract_strided_slice %302 {offsets = [0, 0], sizes = [8, 32], strides = [1, 1]} : vector<8x96xf32> to vector<8x32xf32>
    %304 = vector.extract_strided_slice %302 {offsets = [0, 32], sizes = [8, 32], strides = [1, 1]} : vector<8x96xf32> to vector<8x32xf32>
    %305 = vector.extract_strided_slice %302 {offsets = [0, 64], sizes = [8, 32], strides = [1, 1]} : vector<8x96xf32> to vector<8x32xf32>
    %306 = vector.extract_strided_slice %296 {offsets = [0, 96], sizes = [8, 32], strides = [1, 1]} : vector<8x128xf32> to vector<8x32xf32>
    %307 = math.tanh %306 : vector<8x32xf32>
    %308 = arith.mulf %304, %255 : vector<8x32xf32>
    %309 = arith.mulf %303, %307 : vector<8x32xf32>
    %310 = arith.addf %308, %309 : vector<8x32xf32>
    %311 = math.tanh %310 : vector<8x32xf32>
    %312 = arith.mulf %305, %311 : vector<8x32xf32>
    %313 = vector.broadcast %290 : i32 to vector<8x1xi32>
    %314 = arith.cmpi slt, %313, %18 : vector<8x1xi32>
    %315 = vector.shape_cast %314 : vector<8x1xi1> to vector<8x1xi1>
    %316 = vector.broadcast %315 : vector<8x1xi1> to vector<8x32xi1>
    %317 = arith.select %316, %312, %252 : vector<8x32xi1>, vector<8x32xf32>
    %318 = vector.shape_cast %314 : vector<8x1xi1> to vector<8x1xi1>
    %319 = vector.broadcast %318 : vector<8x1xi1> to vector<8x32xi1>
    %320 = arith.select %319, %310, %255 : vector<8x32xi1>, vector<8x32xf32>
    %321 = arith.index_cast %289 : i32 to index
    %c0_78 = arith.constant 0 : index
    %322 = vector.load %arg14[%321, %c0_78] : memref<64x128xf32, #tpu.memory_space<vmem>>, vector<8x128xf32>
    %323 = arith.truncf %281 : vector<8x32xf32> to vector<8x32xbf16>
    %cst_79 = arith.constant dense<0.000000e+00> : vector<8x128xf32>
    %324 = tpu.matmul %323, %20, %cst_79 {dimension_numbers = #tpu.dot_dimension_numbers<[1], [0], [0], [1], [0, 0, 1, 1], [], []>} : vector<8x32xbf16>, vector<32x128xbf16>, vector<8x128xf32> -> vector<8x128xf32>
    %325 = arith.addf %322, %324 : vector<8x128xf32>
    %326 = vector.extract_strided_slice %325 {offsets = [0, 0], sizes = [8, 96], strides = [1, 1]} : vector<8x128xf32> to vector<8x96xf32>
    %327 = arith.negf %326 : vector<8x96xf32>
    %328 = math.exp %327 : vector<8x96xf32>
    %cst_80 = arith.constant 1.000000e+00 : f32
    %329 = vector.broadcast %cst_80 : f32 to vector<8x96xf32>
    %330 = arith.addf %329, %328 : vector<8x96xf32>
    %331 = arith.divf %329, %330 : vector<8x96xf32>
    %332 = vector.extract_strided_slice %331 {offsets = [0, 0], sizes = [8, 32], strides = [1, 1]} : vector<8x96xf32> to vector<8x32xf32>
    %333 = vector.extract_strided_slice %331 {offsets = [0, 32], sizes = [8, 32], strides = [1, 1]} : vector<8x96xf32> to vector<8x32xf32>
    %334 = vector.extract_strided_slice %331 {offsets = [0, 64], sizes = [8, 32], strides = [1, 1]} : vector<8x96xf32> to vector<8x32xf32>
    %335 = vector.extract_strided_slice %325 {offsets = [0, 96], sizes = [8, 32], strides = [1, 1]} : vector<8x128xf32> to vector<8x32xf32>
    %336 = math.tanh %335 : vector<8x32xf32>
    %337 = arith.mulf %333, %284 : vector<8x32xf32>
    %338 = arith.mulf %332, %336 : vector<8x32xf32>
    %339 = arith.addf %337, %338 : vector<8x32xf32>
    %340 = math.tanh %339 : vector<8x32xf32>
    %341 = arith.mulf %334, %340 : vector<8x32xf32>
    %342 = vector.broadcast %291 : i32 to vector<8x1xi32>
    %343 = arith.cmpi slt, %342, %18 : vector<8x1xi32>
    %344 = vector.shape_cast %343 : vector<8x1xi1> to vector<8x1xi1>
    %345 = vector.broadcast %344 : vector<8x1xi1> to vector<8x32xi1>
    %346 = arith.select %345, %341, %281 : vector<8x32xi1>, vector<8x32xf32>
    %347 = vector.shape_cast %343 : vector<8x1xi1> to vector<8x1xi1>
    %348 = vector.broadcast %347 : vector<8x1xi1> to vector<8x32xi1>
    %349 = arith.select %348, %339, %284 : vector<8x32xi1>, vector<8x32xf32>
    %c5_i32 = arith.constant 5 : i32
    %c8_i32_81 = arith.constant 8 : i32
    %350 = arith.muli %c5_i32, %c8_i32_81 : i32
    %351 = tpu.assume_multiple %350, 8 : i32
    %c7_i32_82 = arith.constant 7 : i32
    %352 = arith.subi %c7_i32_82, %c5_i32 : i32
    %c8_i32_83 = arith.constant 8 : i32
    %353 = arith.muli %352, %c8_i32_83 : i32
    %354 = tpu.assume_multiple %353, 8 : i32
    %355 = arith.addi %0, %c5_i32 : i32
    %c7_i32_84 = arith.constant 7 : i32
    %356 = arith.subi %c7_i32_84, %355 : i32
    %357 = arith.index_cast %351 : i32 to index
    %c0_85 = arith.constant 0 : index
    %358 = vector.load %arg13[%357, %c0_85] : memref<64x128xf32, #tpu.memory_space<vmem>>, vector<8x128xf32>
    %359 = arith.truncf %317 : vector<8x32xf32> to vector<8x32xbf16>
    %cst_86 = arith.constant dense<0.000000e+00> : vector<8x128xf32>
    %360 = tpu.matmul %359, %19, %cst_86 {dimension_numbers = #tpu.dot_dimension_numbers<[1], [0], [0], [1], [0, 0, 1, 1], [], []>} : vector<8x32xbf16>, vector<32x128xbf16>, vector<8x128xf32> -> vector<8x128xf32>
    %361 = arith.addf %358, %360 : vector<8x128xf32>
    %362 = vector.extract_strided_slice %361 {offsets = [0, 0], sizes = [8, 96], strides = [1, 1]} : vector<8x128xf32> to vector<8x96xf32>
    %363 = arith.negf %362 : vector<8x96xf32>
    %364 = math.exp %363 : vector<8x96xf32>
    %cst_87 = arith.constant 1.000000e+00 : f32
    %365 = vector.broadcast %cst_87 : f32 to vector<8x96xf32>
    %366 = arith.addf %365, %364 : vector<8x96xf32>
    %367 = arith.divf %365, %366 : vector<8x96xf32>
    %368 = vector.extract_strided_slice %367 {offsets = [0, 0], sizes = [8, 32], strides = [1, 1]} : vector<8x96xf32> to vector<8x32xf32>
    %369 = vector.extract_strided_slice %367 {offsets = [0, 32], sizes = [8, 32], strides = [1, 1]} : vector<8x96xf32> to vector<8x32xf32>
    %370 = vector.extract_strided_slice %367 {offsets = [0, 64], sizes = [8, 32], strides = [1, 1]} : vector<8x96xf32> to vector<8x32xf32>
    %371 = vector.extract_strided_slice %361 {offsets = [0, 96], sizes = [8, 32], strides = [1, 1]} : vector<8x128xf32> to vector<8x32xf32>
    %372 = math.tanh %371 : vector<8x32xf32>
    %373 = arith.mulf %369, %320 : vector<8x32xf32>
    %374 = arith.mulf %368, %372 : vector<8x32xf32>
    %375 = arith.addf %373, %374 : vector<8x32xf32>
    %376 = math.tanh %375 : vector<8x32xf32>
    %377 = arith.mulf %370, %376 : vector<8x32xf32>
    %378 = vector.broadcast %355 : i32 to vector<8x1xi32>
    %379 = arith.cmpi slt, %378, %18 : vector<8x1xi32>
    %380 = vector.shape_cast %379 : vector<8x1xi1> to vector<8x1xi1>
    %381 = vector.broadcast %380 : vector<8x1xi1> to vector<8x32xi1>
    %382 = arith.select %381, %377, %317 : vector<8x32xi1>, vector<8x32xf32>
    %383 = vector.shape_cast %379 : vector<8x1xi1> to vector<8x1xi1>
    %384 = vector.broadcast %383 : vector<8x1xi1> to vector<8x32xi1>
    %385 = arith.select %384, %375, %320 : vector<8x32xi1>, vector<8x32xf32>
    %386 = arith.index_cast %354 : i32 to index
    %c0_88 = arith.constant 0 : index
    %387 = vector.load %arg14[%386, %c0_88] : memref<64x128xf32, #tpu.memory_space<vmem>>, vector<8x128xf32>
    %388 = arith.truncf %346 : vector<8x32xf32> to vector<8x32xbf16>
    %cst_89 = arith.constant dense<0.000000e+00> : vector<8x128xf32>
    %389 = tpu.matmul %388, %20, %cst_89 {dimension_numbers = #tpu.dot_dimension_numbers<[1], [0], [0], [1], [0, 0, 1, 1], [], []>} : vector<8x32xbf16>, vector<32x128xbf16>, vector<8x128xf32> -> vector<8x128xf32>
    %390 = arith.addf %387, %389 : vector<8x128xf32>
    %391 = vector.extract_strided_slice %390 {offsets = [0, 0], sizes = [8, 96], strides = [1, 1]} : vector<8x128xf32> to vector<8x96xf32>
    %392 = arith.negf %391 : vector<8x96xf32>
    %393 = math.exp %392 : vector<8x96xf32>
    %cst_90 = arith.constant 1.000000e+00 : f32
    %394 = vector.broadcast %cst_90 : f32 to vector<8x96xf32>
    %395 = arith.addf %394, %393 : vector<8x96xf32>
    %396 = arith.divf %394, %395 : vector<8x96xf32>
    %397 = vector.extract_strided_slice %396 {offsets = [0, 0], sizes = [8, 32], strides = [1, 1]} : vector<8x96xf32> to vector<8x32xf32>
    %398 = vector.extract_strided_slice %396 {offsets = [0, 32], sizes = [8, 32], strides = [1, 1]} : vector<8x96xf32> to vector<8x32xf32>
    %399 = vector.extract_strided_slice %396 {offsets = [0, 64], sizes = [8, 32], strides = [1, 1]} : vector<8x96xf32> to vector<8x32xf32>
    %400 = vector.extract_strided_slice %390 {offsets = [0, 96], sizes = [8, 32], strides = [1, 1]} : vector<8x128xf32> to vector<8x32xf32>
    %401 = math.tanh %400 : vector<8x32xf32>
    %402 = arith.mulf %398, %349 : vector<8x32xf32>
    %403 = arith.mulf %397, %401 : vector<8x32xf32>
    %404 = arith.addf %402, %403 : vector<8x32xf32>
    %405 = math.tanh %404 : vector<8x32xf32>
    %406 = arith.mulf %399, %405 : vector<8x32xf32>
    %407 = vector.broadcast %356 : i32 to vector<8x1xi32>
    %408 = arith.cmpi slt, %407, %18 : vector<8x1xi32>
    %409 = vector.shape_cast %408 : vector<8x1xi1> to vector<8x1xi1>
    %410 = vector.broadcast %409 : vector<8x1xi1> to vector<8x32xi1>
    %411 = arith.select %410, %406, %346 : vector<8x32xi1>, vector<8x32xf32>
    %412 = vector.shape_cast %408 : vector<8x1xi1> to vector<8x1xi1>
    %413 = vector.broadcast %412 : vector<8x1xi1> to vector<8x32xi1>
    %414 = arith.select %413, %404, %349 : vector<8x32xi1>, vector<8x32xf32>
    %c6_i32 = arith.constant 6 : i32
    %c8_i32_91 = arith.constant 8 : i32
    %415 = arith.muli %c6_i32, %c8_i32_91 : i32
    %416 = tpu.assume_multiple %415, 8 : i32
    %c7_i32_92 = arith.constant 7 : i32
    %417 = arith.subi %c7_i32_92, %c6_i32 : i32
    %c8_i32_93 = arith.constant 8 : i32
    %418 = arith.muli %417, %c8_i32_93 : i32
    %419 = tpu.assume_multiple %418, 8 : i32
    %420 = arith.addi %0, %c6_i32 : i32
    %c7_i32_94 = arith.constant 7 : i32
    %421 = arith.subi %c7_i32_94, %420 : i32
    %422 = arith.index_cast %416 : i32 to index
    %c0_95 = arith.constant 0 : index
    %423 = vector.load %arg13[%422, %c0_95] : memref<64x128xf32, #tpu.memory_space<vmem>>, vector<8x128xf32>
    %424 = arith.truncf %382 : vector<8x32xf32> to vector<8x32xbf16>
    %cst_96 = arith.constant dense<0.000000e+00> : vector<8x128xf32>
    %425 = tpu.matmul %424, %19, %cst_96 {dimension_numbers = #tpu.dot_dimension_numbers<[1], [0], [0], [1], [0, 0, 1, 1], [], []>} : vector<8x32xbf16>, vector<32x128xbf16>, vector<8x128xf32> -> vector<8x128xf32>
    %426 = arith.addf %423, %425 : vector<8x128xf32>
    %427 = vector.extract_strided_slice %426 {offsets = [0, 0], sizes = [8, 96], strides = [1, 1]} : vector<8x128xf32> to vector<8x96xf32>
    %428 = arith.negf %427 : vector<8x96xf32>
    %429 = math.exp %428 : vector<8x96xf32>
    %cst_97 = arith.constant 1.000000e+00 : f32
    %430 = vector.broadcast %cst_97 : f32 to vector<8x96xf32>
    %431 = arith.addf %430, %429 : vector<8x96xf32>
    %432 = arith.divf %430, %431 : vector<8x96xf32>
    %433 = vector.extract_strided_slice %432 {offsets = [0, 0], sizes = [8, 32], strides = [1, 1]} : vector<8x96xf32> to vector<8x32xf32>
    %434 = vector.extract_strided_slice %432 {offsets = [0, 32], sizes = [8, 32], strides = [1, 1]} : vector<8x96xf32> to vector<8x32xf32>
    %435 = vector.extract_strided_slice %432 {offsets = [0, 64], sizes = [8, 32], strides = [1, 1]} : vector<8x96xf32> to vector<8x32xf32>
    %436 = vector.extract_strided_slice %426 {offsets = [0, 96], sizes = [8, 32], strides = [1, 1]} : vector<8x128xf32> to vector<8x32xf32>
    %437 = math.tanh %436 : vector<8x32xf32>
    %438 = arith.mulf %434, %385 : vector<8x32xf32>
    %439 = arith.mulf %433, %437 : vector<8x32xf32>
    %440 = arith.addf %438, %439 : vector<8x32xf32>
    %441 = math.tanh %440 : vector<8x32xf32>
    %442 = arith.mulf %435, %441 : vector<8x32xf32>
    %443 = vector.broadcast %420 : i32 to vector<8x1xi32>
    %444 = arith.cmpi slt, %443, %18 : vector<8x1xi32>
    %445 = vector.shape_cast %444 : vector<8x1xi1> to vector<8x1xi1>
    %446 = vector.broadcast %445 : vector<8x1xi1> to vector<8x32xi1>
    %447 = arith.select %446, %442, %382 : vector<8x32xi1>, vector<8x32xf32>
    %448 = vector.shape_cast %444 : vector<8x1xi1> to vector<8x1xi1>
    %449 = vector.broadcast %448 : vector<8x1xi1> to vector<8x32xi1>
    %450 = arith.select %449, %440, %385 : vector<8x32xi1>, vector<8x32xf32>
    %451 = arith.index_cast %419 : i32 to index
    %c0_98 = arith.constant 0 : index
    %452 = vector.load %arg14[%451, %c0_98] : memref<64x128xf32, #tpu.memory_space<vmem>>, vector<8x128xf32>
    %453 = arith.truncf %411 : vector<8x32xf32> to vector<8x32xbf16>
    %cst_99 = arith.constant dense<0.000000e+00> : vector<8x128xf32>
    %454 = tpu.matmul %453, %20, %cst_99 {dimension_numbers = #tpu.dot_dimension_numbers<[1], [0], [0], [1], [0, 0, 1, 1], [], []>} : vector<8x32xbf16>, vector<32x128xbf16>, vector<8x128xf32> -> vector<8x128xf32>
    %455 = arith.addf %452, %454 : vector<8x128xf32>
    %456 = vector.extract_strided_slice %455 {offsets = [0, 0], sizes = [8, 96], strides = [1, 1]} : vector<8x128xf32> to vector<8x96xf32>
    %457 = arith.negf %456 : vector<8x96xf32>
    %458 = math.exp %457 : vector<8x96xf32>
    %cst_100 = arith.constant 1.000000e+00 : f32
    %459 = vector.broadcast %cst_100 : f32 to vector<8x96xf32>
    %460 = arith.addf %459, %458 : vector<8x96xf32>
    %461 = arith.divf %459, %460 : vector<8x96xf32>
    %462 = vector.extract_strided_slice %461 {offsets = [0, 0], sizes = [8, 32], strides = [1, 1]} : vector<8x96xf32> to vector<8x32xf32>
    %463 = vector.extract_strided_slice %461 {offsets = [0, 32], sizes = [8, 32], strides = [1, 1]} : vector<8x96xf32> to vector<8x32xf32>
    %464 = vector.extract_strided_slice %461 {offsets = [0, 64], sizes = [8, 32], strides = [1, 1]} : vector<8x96xf32> to vector<8x32xf32>
    %465 = vector.extract_strided_slice %455 {offsets = [0, 96], sizes = [8, 32], strides = [1, 1]} : vector<8x128xf32> to vector<8x32xf32>
    %466 = math.tanh %465 : vector<8x32xf32>
    %467 = arith.mulf %463, %414 : vector<8x32xf32>
    %468 = arith.mulf %462, %466 : vector<8x32xf32>
    %469 = arith.addf %467, %468 : vector<8x32xf32>
    %470 = math.tanh %469 : vector<8x32xf32>
    %471 = arith.mulf %464, %470 : vector<8x32xf32>
    %472 = vector.broadcast %421 : i32 to vector<8x1xi32>
    %473 = arith.cmpi slt, %472, %18 : vector<8x1xi32>
    %474 = vector.shape_cast %473 : vector<8x1xi1> to vector<8x1xi1>
    %475 = vector.broadcast %474 : vector<8x1xi1> to vector<8x32xi1>
    %476 = arith.select %475, %471, %411 : vector<8x32xi1>, vector<8x32xf32>
    %477 = vector.shape_cast %473 : vector<8x1xi1> to vector<8x1xi1>
    %478 = vector.broadcast %477 : vector<8x1xi1> to vector<8x32xi1>
    %479 = arith.select %478, %469, %414 : vector<8x32xi1>, vector<8x32xf32>
    %c7_i32_101 = arith.constant 7 : i32
    %c8_i32_102 = arith.constant 8 : i32
    %480 = arith.muli %c7_i32_101, %c8_i32_102 : i32
    %481 = tpu.assume_multiple %480, 8 : i32
    %c7_i32_103 = arith.constant 7 : i32
    %482 = arith.subi %c7_i32_103, %c7_i32_101 : i32
    %c8_i32_104 = arith.constant 8 : i32
    %483 = arith.muli %482, %c8_i32_104 : i32
    %484 = tpu.assume_multiple %483, 8 : i32
    %485 = arith.addi %0, %c7_i32_101 : i32
    %c7_i32_105 = arith.constant 7 : i32
    %486 = arith.subi %c7_i32_105, %485 : i32
    %487 = arith.index_cast %481 : i32 to index
    %c0_106 = arith.constant 0 : index
    %488 = vector.load %arg13[%487, %c0_106] : memref<64x128xf32, #tpu.memory_space<vmem>>, vector<8x128xf32>
    %489 = arith.truncf %447 : vector<8x32xf32> to vector<8x32xbf16>
    %cst_107 = arith.constant dense<0.000000e+00> : vector<8x128xf32>
    %490 = tpu.matmul %489, %19, %cst_107 {dimension_numbers = #tpu.dot_dimension_numbers<[1], [0], [0], [1], [0, 0, 1, 1], [], []>} : vector<8x32xbf16>, vector<32x128xbf16>, vector<8x128xf32> -> vector<8x128xf32>
    %491 = arith.addf %488, %490 : vector<8x128xf32>
    %492 = vector.extract_strided_slice %491 {offsets = [0, 0], sizes = [8, 96], strides = [1, 1]} : vector<8x128xf32> to vector<8x96xf32>
    %493 = arith.negf %492 : vector<8x96xf32>
    %494 = math.exp %493 : vector<8x96xf32>
    %cst_108 = arith.constant 1.000000e+00 : f32
    %495 = vector.broadcast %cst_108 : f32 to vector<8x96xf32>
    %496 = arith.addf %495, %494 : vector<8x96xf32>
    %497 = arith.divf %495, %496 : vector<8x96xf32>
    %498 = vector.extract_strided_slice %497 {offsets = [0, 0], sizes = [8, 32], strides = [1, 1]} : vector<8x96xf32> to vector<8x32xf32>
    %499 = vector.extract_strided_slice %497 {offsets = [0, 32], sizes = [8, 32], strides = [1, 1]} : vector<8x96xf32> to vector<8x32xf32>
    %500 = vector.extract_strided_slice %497 {offsets = [0, 64], sizes = [8, 32], strides = [1, 1]} : vector<8x96xf32> to vector<8x32xf32>
    %501 = vector.extract_strided_slice %491 {offsets = [0, 96], sizes = [8, 32], strides = [1, 1]} : vector<8x128xf32> to vector<8x32xf32>
    %502 = math.tanh %501 : vector<8x32xf32>
    %503 = arith.mulf %499, %450 : vector<8x32xf32>
    %504 = arith.mulf %498, %502 : vector<8x32xf32>
    %505 = arith.addf %503, %504 : vector<8x32xf32>
    %506 = math.tanh %505 : vector<8x32xf32>
    %507 = arith.mulf %500, %506 : vector<8x32xf32>
    %508 = vector.broadcast %485 : i32 to vector<8x1xi32>
    %509 = arith.cmpi slt, %508, %18 : vector<8x1xi32>
    %510 = vector.shape_cast %509 : vector<8x1xi1> to vector<8x1xi1>
    %511 = vector.broadcast %510 : vector<8x1xi1> to vector<8x32xi1>
    %512 = arith.select %511, %507, %447 : vector<8x32xi1>, vector<8x32xf32>
    %513 = vector.shape_cast %509 : vector<8x1xi1> to vector<8x1xi1>
    %514 = vector.broadcast %513 : vector<8x1xi1> to vector<8x32xi1>
    %515 = arith.select %514, %505, %450 : vector<8x32xi1>, vector<8x32xf32>
    %516 = arith.index_cast %484 : i32 to index
    %c0_109 = arith.constant 0 : index
    %517 = vector.load %arg14[%516, %c0_109] : memref<64x128xf32, #tpu.memory_space<vmem>>, vector<8x128xf32>
    %518 = arith.truncf %476 : vector<8x32xf32> to vector<8x32xbf16>
    %cst_110 = arith.constant dense<0.000000e+00> : vector<8x128xf32>
    %519 = tpu.matmul %518, %20, %cst_110 {dimension_numbers = #tpu.dot_dimension_numbers<[1], [0], [0], [1], [0, 0, 1, 1], [], []>} : vector<8x32xbf16>, vector<32x128xbf16>, vector<8x128xf32> -> vector<8x128xf32>
    %520 = arith.addf %517, %519 : vector<8x128xf32>
    %521 = vector.extract_strided_slice %520 {offsets = [0, 0], sizes = [8, 96], strides = [1, 1]} : vector<8x128xf32> to vector<8x96xf32>
    %522 = arith.negf %521 : vector<8x96xf32>
    %523 = math.exp %522 : vector<8x96xf32>
    %cst_111 = arith.constant 1.000000e+00 : f32
    %524 = vector.broadcast %cst_111 : f32 to vector<8x96xf32>
    %525 = arith.addf %524, %523 : vector<8x96xf32>
    %526 = arith.divf %524, %525 : vector<8x96xf32>
    %527 = vector.extract_strided_slice %526 {offsets = [0, 0], sizes = [8, 32], strides = [1, 1]} : vector<8x96xf32> to vector<8x32xf32>
    %528 = vector.extract_strided_slice %526 {offsets = [0, 32], sizes = [8, 32], strides = [1, 1]} : vector<8x96xf32> to vector<8x32xf32>
    %529 = vector.extract_strided_slice %526 {offsets = [0, 64], sizes = [8, 32], strides = [1, 1]} : vector<8x96xf32> to vector<8x32xf32>
    %530 = vector.extract_strided_slice %520 {offsets = [0, 96], sizes = [8, 32], strides = [1, 1]} : vector<8x128xf32> to vector<8x32xf32>
    %531 = math.tanh %530 : vector<8x32xf32>
    %532 = arith.mulf %528, %479 : vector<8x32xf32>
    %533 = arith.mulf %527, %531 : vector<8x32xf32>
    %534 = arith.addf %532, %533 : vector<8x32xf32>
    %535 = math.tanh %534 : vector<8x32xf32>
    %536 = arith.mulf %529, %535 : vector<8x32xf32>
    %537 = vector.broadcast %486 : i32 to vector<8x1xi32>
    %538 = arith.cmpi slt, %537, %18 : vector<8x1xi32>
    %539 = vector.shape_cast %538 : vector<8x1xi1> to vector<8x1xi1>
    %540 = vector.broadcast %539 : vector<8x1xi1> to vector<8x32xi1>
    %541 = arith.select %540, %536, %476 : vector<8x32xi1>, vector<8x32xf32>
    %542 = vector.shape_cast %538 : vector<8x1xi1> to vector<8x1xi1>
    %543 = vector.broadcast %542 : vector<8x1xi1> to vector<8x32xi1>
    %544 = arith.select %543, %534, %479 : vector<8x32xi1>, vector<8x32xf32>
    %c8_i32_112 = arith.constant 8 : i32
    %c0_113 = arith.constant 0 : index
    %c0_114 = arith.constant 0 : index
    %545 = vector.load %arg9[%c0_113, %c0_114] : memref<8x32xf32, #tpu.memory_space<vmem>>, vector<8x32xf32>
    tpu.vector_store %arg9[%c0_113, %c0_114], %512 {strides = array<i32>} : memref<8x32xf32, #tpu.memory_space<vmem>>, vector<8x32xf32>,
    %c0_115 = arith.constant 0 : index
    %c0_116 = arith.constant 0 : index
    %546 = vector.load %arg11[%c0_115, %c0_116] : memref<8x32xf32, #tpu.memory_space<vmem>>, vector<8x32xf32>
    tpu.vector_store %arg11[%c0_115, %c0_116], %515 {strides = array<i32>} : memref<8x32xf32, #tpu.memory_space<vmem>>, vector<8x32xf32>,
    %c0_117 = arith.constant 0 : index
    %c0_118 = arith.constant 0 : index
    %547 = vector.load %arg10[%c0_117, %c0_118] : memref<8x32xf32, #tpu.memory_space<vmem>>, vector<8x32xf32>
    tpu.vector_store %arg10[%c0_117, %c0_118], %541 {strides = array<i32>} : memref<8x32xf32, #tpu.memory_space<vmem>>, vector<8x32xf32>,
    %c0_119 = arith.constant 0 : index
    %c0_120 = arith.constant 0 : index
    %548 = vector.load %arg12[%c0_119, %c0_120] : memref<8x32xf32, #tpu.memory_space<vmem>>, vector<8x32xf32>
    tpu.vector_store %arg12[%c0_119, %c0_120], %544 {strides = array<i32>} : memref<8x32xf32, #tpu.memory_space<vmem>>, vector<8x32xf32>,
    return
  }
  func.func @transform_0(%arg0: i32) -> (i32, i32) {
    %c0_i32 = arith.constant 0 : i32
    %c0_i32_0 = arith.constant 0 : i32
    return %arg0, %c0_i32 : i32, i32
  }
  func.func @transform_1(%arg0: i32) -> (i32, i32) {
    %c0_i32 = arith.constant 0 : i32
    %c0_i32_0 = arith.constant 0 : i32
    %c0_i32_1 = arith.constant 0 : i32
    return %c0_i32, %c0_i32_0 : i32, i32
  }
  func.func @transform_2(%arg0: i32) -> (i32, i32) {
    %c0_i32 = arith.constant 0 : i32
    %c0_i32_0 = arith.constant 0 : i32
    %c0_i32_1 = arith.constant 0 : i32
    return %c0_i32, %c0_i32_0 : i32, i32
  }
  func.func @transform_3(%arg0: i32) -> (i32, i32) {
    %c0_i32 = arith.constant 0 : i32
    %c0_i32_0 = arith.constant 0 : i32
    %c0_i32_1 = arith.constant 0 : i32
    return %c0_i32, %c0_i32_0 : i32, i32
  }
  func.func @transform_4(%arg0: i32) -> (i32, i32) {
    %c0_i32 = arith.constant 0 : i32
    %c0_i32_0 = arith.constant 0 : i32
    %c0_i32_1 = arith.constant 0 : i32
    return %c0_i32, %c0_i32_0 : i32, i32
  }
  func.func @transform_5(%arg0: i32) -> (i32, i32) {
    %c0_i32 = arith.constant 0 : i32
    %c0_i32_0 = arith.constant 0 : i32
    %c0_i32_1 = arith.constant 0 : i32
    return %c0_i32, %c0_i32_0 : i32, i32
  }
  func.func @transform_6(%arg0: i32) -> (i32, i32) {
    %c0_i32 = arith.constant 0 : i32
    %c0_i32_0 = arith.constant 0 : i32
    %c0_i32_1 = arith.constant 0 : i32
    return %c0_i32, %c0_i32_0 : i32, i32
  }
  func.func @transform_7(%arg0: i32) -> (i32, i32) {
    %c0_i32 = arith.constant 0 : i32
    %c0_i32_0 = arith.constant 0 : i32
    %c0_i32_1 = arith.constant 0 : i32
    return %c0_i32, %c0_i32_0 : i32, i32
  }
  func.func @transform_8(%arg0: i32) -> (i32, i32) {
    %c0_i32 = arith.constant 0 : i32
    %c0_i32_0 = arith.constant 0 : i32
    %c0_i32_1 = arith.constant 0 : i32
    return %c0_i32, %c0_i32_0 : i32, i32
  }
  func.func @transform_9(%arg0: i32) -> (i32, i32) {
    %c0_i32 = arith.constant 0 : i32
    %c0_i32_0 = arith.constant 0 : i32
    %c0_i32_1 = arith.constant 0 : i32
    return %c0_i32, %c0_i32_0 : i32, i32
  }
}

</mosaic_0001>

<llo_original>
// kernel: tpu_custom_call.1
$region0: #{tpu_custom_call.1}
  #allocation0 [shape = 'u32[]', space=smem, size = 0x4, offset = 0x4, fixed_abs, tag = 'smem constant byte address 0x4 - core index']
  #allocation1 [shape = 'u32[144,128]{1,0:T(1,128)}', space=vmem, size = 0x12000, scoped, tag = 'internal scratch']
  #allocation2 [shape = 'f32[8,32]{1,0:T(8,128)}', space=vmem, size = 0x1000, scoped, tag = 'scratch operand']
  #allocation3 [shape = 'f32[8,32]{1,0:T(8,128)}', space=vmem, size = 0x1000, scoped, tag = 'scratch operand']
  #allocation4 [shape = 'f32[64,128]{1,0:T(8,128)}', space=vmem, size = 0x8000, scoped, tag = 'scratch operand']
  #allocation5 [shape = 'f32[64,128]{1,0:T(8,128)}', space=vmem, size = 0x8000, scoped, tag = 'scratch operand']
  %s0 = inlined_call_operand.vmem [shape: bf16[64,32], index: 0, kind: input, shape index: {}]
  %s1 = inlined_call_operand.vmem [shape: s32[8,1], index: 1, kind: input, shape index: {}]
  %s2 = inlined_call_operand.vmem [shape: bf16[32,128], index: 2, kind: input, shape index: {}]
  %s3 = inlined_call_operand.vmem [shape: bf16[32,128], index: 3, kind: input, shape index: {}]
  %s4 = inlined_call_operand.hbm [shape: f32[1,128], index: 4, kind: input, shape index: {}]
  %s5 = inlined_call_operand.vmem [shape: bf16[32,128], index: 5, kind: input, shape index: {}]
  %s6 = inlined_call_operand.vmem [shape: bf16[32,128], index: 6, kind: input, shape index: {}]
  %s7 = inlined_call_operand.vmem [shape: f32[1,128], index: 7, kind: input, shape index: {}]
  %s8 = inlined_call_operand.hbm [shape: f32[8,32], index: 8, kind: output, shape index: {0}]
  %s9 = inlined_call_operand.hbm [shape: f32[8,32], index: 9, kind: output, shape index: {1}]
  %10 = xla_tuple %s8, %s9
  %s11 = sld [smem:[#allocation0]]
  $region58: #{tpu_custom_call.1} parent=0
    _
  %s13 = ssub.s32 1, %s11
  %s14 = scalar_select 0, %s13, %s11
  $region1: #{tpu_custom_call.1} parent=0
    #allocation6 [shape = 'u8[512]{0}', space=vmem, size = 0x400, scoped, tag = 'input window, operand 4, single buffered']
    #allocation7 [shape = 's32[1]{0}', space=sflag, size = 0x4, scoped, tag = 'scoped memory for tpu_custom_call.1']
    #allocation8 [shape = 's32[1]{0}', space=sflag, size = 0x4, scoped, tag = 'scoped memory for tpu_custom_call.1']
    #allocation9 [shape = 'u8[4096]{0}', space=vmem, size = 0x1000, scoped, tag = 'output window, operand 0, single buffered']
    #allocation10 [shape = 'u8[4096]{0}', space=vmem, size = 0x1000, scoped, tag = 'output window, operand 1, single buffered']
    #allocation11 [shape = 's32[1]{0}', space=sflag, size = 0x4, scoped, tag = 'scoped memory for tpu_custom_call.1']
    %15 = vsyncpa [#allocation7], 0
    %16 = vsyncpa [#allocation8], 0
    %17 = vsyncpa [#allocation11], 0
    // Predicated region
    $region2: #{tpu_custom_call.1} parent=1 // pred_check
      _
    $region3: #{tpu_custom_call.1} parent=1 // pred_check_branch
      %19 = sbr.rel (0) target = $region5
    $region4: #{tpu_custom_call.1} parent=1 // pred_region
      _
    $region5: #{tpu_custom_call.1} parent=1 // pred_fallthru
      _
    // Predicated region
    $region6: #{tpu_custom_call.1} parent=1 // pred_check
      _
    $region7: #{tpu_custom_call.1} parent=1 // pred_check_branch
      %21 = sbr.rel (0) target = $region9
    $region8: #{tpu_custom_call.1} parent=1 // pred_region
      _
    $region9: #{tpu_custom_call.1} parent=1 // pred_fallthru
      _
    // Predicated region
    $region10: #{tpu_custom_call.1} parent=1 // pred_check
      _
    $region11: #{tpu_custom_call.1} parent=1 // pred_check_branch
      %23 = sbr.rel (0) target = $region13
    $region12: #{tpu_custom_call.1} parent=1 // pred_region
      _
    $region13: #{tpu_custom_call.1} parent=1 // pred_fallthru
      _
    // Predicated region
    $region14: #{tpu_custom_call.1} parent=1 // pred_check
      _
    $region15: #{tpu_custom_call.1} parent=1 // pred_check_branch
      %25 = sbr.rel (0) target = $region17
    $region16: #{tpu_custom_call.1} parent=1 // pred_region
      _
    $region17: #{tpu_custom_call.1} parent=1 // pred_fallthru
      _
    // Predicated region
    $region18: #{tpu_custom_call.1} parent=1 // pred_check
      _
    $region19: #{tpu_custom_call.1} parent=1 // pred_check_branch
      %27 = sbr.rel (0) target = $region21
    $region20: #{tpu_custom_call.1} parent=1 // pred_region
      %s29 = ssub.s32 16, 16
      %30 = vsyncadd [#allocation7], %s29
      %s32 = sshll.u32 [#allocation6], 4
      %s33 = int_to_ptr.vmem [resolvable:$true] %s32
      %35 = dma.hbm_to_vmem [thread:$0]  %s4, 16, %s33, [#allocation7]
    $region21: #{tpu_custom_call.1} parent=1 // pred_fallthru
      _
    // Predicated region
    $region22: #{tpu_custom_call.1} parent=1 // pred_check
      _
    $region23: #{tpu_custom_call.1} parent=1 // pred_check_branch
      %37 = sbr.rel (0) target = $region25
    $region24: #{tpu_custom_call.1} parent=1 // pred_region
      _
    $region25: #{tpu_custom_call.1} parent=1 // pred_fallthru
      _
    // Predicated region
    $region26: #{tpu_custom_call.1} parent=1 // pred_check
      _
    $region27: #{tpu_custom_call.1} parent=1 // pred_check_branch
      %39 = sbr.rel (0) target = $region29
    $region28: #{tpu_custom_call.1} parent=1 // pred_region
      _
    $region29: #{tpu_custom_call.1} parent=1 // pred_fallthru
      _
    // Predicated region
    $region30: #{tpu_custom_call.1} parent=1 // pred_check
      _
    $region31: #{tpu_custom_call.1} parent=1 // pred_check_branch
      %41 = sbr.rel (0) target = $region33
    $region32: #{tpu_custom_call.1} parent=1 // pred_region
      _
    $region33: #{tpu_custom_call.1} parent=1 // pred_fallthru
      _
    // Predicated region
    $region34: #{tpu_custom_call.1} parent=1 // pred_check
      _
    $region35: #{tpu_custom_call.1} parent=1 // pred_check_branch
      %43 = sbr.rel (0) target = $region37
    $region36: #{tpu_custom_call.1} parent=1 // pred_region
      %44 = dma.done [#allocation7], 16
    $region37: #{tpu_custom_call.1} parent=1 // pred_fallthru
      _
    %s46 = smul.u32 0, 8
    %p47 = scmp.eq.s32.totalorder 0, 0
    // Predicated region
    $region38: #{tpu_custom_call.1} parent=1 // pred_check
      %p48 = pneg %p47
    $region39: #{tpu_custom_call.1} parent=1 // pred_check_branch
      %50 = sbr.rel (%p48) target = $region41
    $region40: #{tpu_custom_call.1} parent=1 // pred_region
      %vm51 = vcmask 261120
      %52 = vst.msk [vmem:[#allocation9] sm:$0xff] %vm51, 0.0
      %53 = vst.msk [vmem:[#allocation10] sm:$0xff] %vm51, 0.0
      %54 = vst.msk [vmem:[#allocation2] sm:$0xff] %vm51, 0.0
      %55 = vst.msk [vmem:[#allocation3] sm:$0xff] %vm51, 0.0
    $region41: #{tpu_custom_call.1} parent=1 // pred_fallthru
      _
    %v56 = vld [vmem:[%s0] sm:$0xf]
    %v57 = vld [vmem:[%s0 + $0x4] sm:$0xf]
    %v58 = vld [vmem:[%s0 + $0x8] sm:$0xf]
    %v59 = vld [vmem:[%s0 + $0xc] sm:$0xf]
    %v60 = vld [vmem:[%s0 + $0x10] sm:$0xf]
    %v61 = vld [vmem:[%s0 + $0x14] sm:$0xf]
    %v62 = vld [vmem:[%s0 + $0x18] sm:$0xf]
    %v63 = vld [vmem:[%s0 + $0x1c] sm:$0xf]
    %v64 = vld [vmem:[%s2] sm:$0xf]
    %v65 = vld [vmem:[%s2 + $0x4] sm:$0xf]
    %v66 = vld [vmem:[%s2 + $0x8] sm:$0xf]
    %v67 = vld [vmem:[%s2 + $0xc] sm:$0xf]
    %v68 = vld [vmem:[#allocation6] sm:$0x1]
    %v70 = vlaneseq
    %v71 = vshrl.u32 %v70, 7
    %v72 = vsub.s32 0, %v71
    %v73 = vrot.slane %v68, %v72
    %v83 = vunpack.c.l.b16 %v56
    %v84 = vunpack.c.l.b16 %v57
    %v85 = vunpack.c.l.b16 %v58
    %v86 = vunpack.c.l.b16 %v59
    %v87 = vunpack.c.l.b16 %v60
    %v88 = vunpack.c.l.b16 %v61
    %v89 = vunpack.c.l.b16 %v62
    %v90 = vunpack.c.l.b16 %v63
    %v91 = vpack.c.b16 %v84, %v83
    %v92 = vpack.c.b16 %v86, %v85
    %v93 = vpack.c.b16 %v88, %v87
    %v94 = vpack.c.b16 %v90, %v89
    %v99 = vunpack.c.l.b16 %v64
    %v100 = vunpack.c.l.b16 %v65
    %v101 = vunpack.c.l.b16 %v66
    %v102 = vunpack.c.l.b16 %v67
    %v103 = vpack.c.b16 %v100, %v99
    %v104 = vpack.c.b16 %v102, %v101
    %vm107 = vcmask 261120
    %v109 = vsel %vm107, %v91, 0
    %v112 = vsel %vm107, %v92, 0
    %v115 = vsel %vm107, %v93, 0
    %v118 = vsel %vm107, %v94, 0
    %120 = vmatprep.subr.bf16.mxu0 0
    %121 = vmatpush1.bf16.msra.mxu0 0
    %122 = vmatprep.subr.bf16.mxu0 0
    %123 = vmatpush1.bf16.msra.mxu0 0
    %124 = vmatprep.subr.bf16.mxu0 0
    %125 = vmatpush1.bf16.msra.mxu0 0
    %126 = vmatprep.subr.bf16.mxu0 0
    %127 = vmatpush1.bf16.msra.mxu0 0
    %128 = vmatprep.subr.bf16.mxu0 0
    %129 = vmatpush1.bf16.msra.mxu0 0
    %130 = vmatprep.subr.bf16.mxu0 0
    %131 = vmatpush1.bf16.msra.mxu0 0
    %132 = vmatprep.subr.bf16.mxu0 0
    %133 = vmatpush1.bf16.msra.mxu0 %v104
    %134 = vmatprep.subr.bf16.mxu0 0
    %135 = vmatpush1.bf16.msra.mxu0 %v103
    %136 = vmatprep.subr.bf16.mxu0 0
    %137 = vmatpush2.bf16.msra.mxu0 0
    %138 = vmatprep.subr.bf16.mxu0 0
    %139 = vmatpush2.bf16.msra.mxu0 0
    %140 = vmatprep.subr.bf16.mxu0 0
    %141 = vmatpush2.bf16.msra.mxu0 0
    %142 = vmatprep.subr.bf16.mxu0 0
    %143 = vmatpush2.bf16.msra.mxu0 0
    %144 = vmatprep.subr.bf16.mxu0 0
    %145 = vmatpush2.bf16.msra.mxu0 0
    %146 = vmatprep.subr.bf16.mxu0 0
    %147 = vmatpush2.bf16.msra.mxu0 0
    %148 = vmatprep.subr.bf16.mxu0 0
    %149 = vmatpush2.bf16.msra.mxu0 0
    %150 = vmatprep.subr.bf16.mxu0 0
    %151 = vmatpush2.bf16.msra.mxu0 0
    %152 = vmatprep.mubr.bf16.mxu0 0
    %153 = vmatmul.mubr.bf16.gmra.mxu0 %v109
    %v154 = vpop.f32.mrf.mxu0
    %v155 = vadd.f32 %v73, %v154
    %v156 = vpop.f32.mrf.mxu0
    %v157 = vpop.f32.mrf.mxu0
    %v158 = vadd.f32 %v73, %v157
    %v159 = vpop.f32.mrf.mxu0
    %160 = vmatprep.mubr.bf16.mxu0 0
    %161 = vmatmul.mubr.bf16.gmra.mxu0 %v112
    %v162 = vpop.f32.mrf.mxu0
    %v163 = vadd.f32 %v73, %v162
    %v164 = vpop.f32.mrf.mxu0
    %v165 = vpop.f32.mrf.mxu0
    %v166 = vadd.f32 %v73, %v165
    %v167 = vpop.f32.mrf.mxu0
    %168 = vmatprep.mubr.bf16.mxu0 0
    %169 = vmatmul.mubr.bf16.gmra.mxu0 %v115
    %v170 = vpop.f32.mrf.mxu0
    %v171 = vadd.f32 %v73, %v170
    %v172 = vpop.f32.mrf.mxu0
    %v173 = vpop.f32.mrf.mxu0
    %v174 = vadd.f32 %v73, %v173
    %v175 = vpop.f32.mrf.mxu0
    %176 = vmatprep.mubr.bf16.mxu0 0
    %177 = vmatmul.mubr.bf16.gmra.mxu0 %v118
    %v178 = vpop.f32.mrf.mxu0
    %v179 = vadd.f32 %v73, %v178
    %v180 = vpop.f32.mrf.mxu0
    %v181 = vpop.f32.mrf.mxu0
    %v182 = vadd.f32 %v73, %v181
    %v183 = vpop.f32.mrf.mxu0
    %184 = vdwg.mxu0
    %185 = vst [vmem:[#allocation4] sm:$0xff] %v155
    %186 = vst [vmem:[#allocation4 + $0x8] sm:$0xff] %v158
    %187 = vst [vmem:[#allocation4 + $0x10] sm:$0xff] %v163
    %188 = vst [vmem:[#allocation4 + $0x18] sm:$0xff] %v166
    %189 = vst [vmem:[#allocation4 + $0x20] sm:$0xff] %v171
    %190 = vst [vmem:[#allocation4 + $0x28] sm:$0xff] %v174
    %191 = vst [vmem:[#allocation4 + $0x30] sm:$0xff] %v179
    %192 = vst [vmem:[#allocation4 + $0x38] sm:$0xff] %v182
    %v193 = vld [vmem:[%s0] sm:$0xf]
    %v194 = vld [vmem:[%s0 + $0x4] sm:$0xf]
    %v195 = vld [vmem:[%s0 + $0x8] sm:$0xf]
    %v196 = vld [vmem:[%s0 + $0xc] sm:$0xf]
    %v197 = vld [vmem:[%s0 + $0x10] sm:$0xf]
    %v198 = vld [vmem:[%s0 + $0x14] sm:$0xf]
    %v199 = vld [vmem:[%s0 + $0x18] sm:$0xf]
    %v200 = vld [vmem:[%s0 + $0x1c] sm:$0xf]
    %v201 = vld [vmem:[%s5] sm:$0xf]
    %v202 = vld [vmem:[%s5 + $0x4] sm:$0xf]
    %v203 = vld [vmem:[%s5 + $0x8] sm:$0xf]
    %v204 = vld [vmem:[%s5 + $0xc] sm:$0xf]
    %v205 = vld [vmem:[%s7] sm:$0x1]
    %v207 = vlaneseq
    %v208 = vshrl.u32 %v207, 7
    %v209 = vsub.s32 0, %v208
    %v210 = vrot.slane %v205, %v209
    %v220 = vunpack.c.l.b16 %v193
    %v221 = vunpack.c.l.b16 %v194
    %v222 = vunpack.c.l.b16 %v195
    %v223 = vunpack.c.l.b16 %v196
    %v224 = vunpack.c.l.b16 %v197
    %v225 = vunpack.c.l.b16 %v198
    %v226 = vunpack.c.l.b16 %v199
    %v227 = vunpack.c.l.b16 %v200
    %v228 = vpack.c.b16 %v221, %v220
    %v229 = vpack.c.b16 %v223, %v222
    %v230 = vpack.c.b16 %v225, %v224
    %v231 = vpack.c.b16 %v227, %v226
    %v236 = vunpack.c.l.b16 %v201
    %v237 = vunpack.c.l.b16 %v202
    %v238 = vunpack.c.l.b16 %v203
    %v239 = vunpack.c.l.b16 %v204
    %v240 = vpack.c.b16 %v237, %v236
    %v241 = vpack.c.b16 %v239, %v238
    %v245 = vsel %vm107, %v228, 0
    %v248 = vsel %vm107, %v229, 0
    %v251 = vsel %vm107, %v230, 0
    %v254 = vsel %vm107, %v231, 0
    %256 = vmatprep.subr.bf16.mxu0 0
    %257 = vmatpush1.bf16.msra.mxu0 0
    %258 = vmatprep.subr.bf16.mxu0 0
    %259 = vmatpush1.bf16.msra.mxu0 0
    %260 = vmatprep.subr.bf16.mxu0 0
    %261 = vmatpush1.bf16.msra.mxu0 0
    %262 = vmatprep.subr.bf16.mxu0 0
    %263 = vmatpush1.bf16.msra.mxu0 0
    %264 = vmatprep.subr.bf16.mxu0 0
    %265 = vmatpush1.bf16.msra.mxu0 0
    %266 = vmatprep.subr.bf16.mxu0 0
    %267 = vmatpush1.bf16.msra.mxu0 0
    %268 = vmatprep.subr.bf16.mxu0 0
    %269 = vmatpush1.bf16.msra.mxu0 %v241
    %270 = vmatprep.subr.bf16.mxu0 0
    %271 = vmatpush1.bf16.msra.mxu0 %v240
    %272 = vmatprep.subr.bf16.mxu0 0
    %273 = vmatpush2.bf16.msra.mxu0 0
    %274 = vmatprep.subr.bf16.mxu0 0
    %275 = vmatpush2.bf16.msra.mxu0 0
    %276 = vmatprep.subr.bf16.mxu0 0
    %277 = vmatpush2.bf16.msra.mxu0 0
    %278 = vmatprep.subr.bf16.mxu0 0
    %279 = vmatpush2.bf16.msra.mxu0 0
    %280 = vmatprep.subr.bf16.mxu0 0
    %281 = vmatpush2.bf16.msra.mxu0 0
    %282 = vmatprep.subr.bf16.mxu0 0
    %283 = vmatpush2.bf16.msra.mxu0 0
    %284 = vmatprep.subr.bf16.mxu0 0
    %285 = vmatpush2.bf16.msra.mxu0 0
    %286 = vmatprep.subr.bf16.mxu0 0
    %287 = vmatpush2.bf16.msra.mxu0 0
    %288 = vmatprep.mubr.bf16.mxu0 0
    %289 = vmatmul.mubr.bf16.gmra.mxu0 %v245
    %v290 = vpop.f32.mrf.mxu0
    %v291 = vadd.f32 %v210, %v290
    %v292 = vpop.f32.mrf.mxu0
    %v293 = vpop.f32.mrf.mxu0
    %v294 = vadd.f32 %v210, %v293
    %v295 = vpop.f32.mrf.mxu0
    %296 = vmatprep.mubr.bf16.mxu0 0
    %297 = vmatmul.mubr.bf16.gmra.mxu0 %v248
    %v298 = vpop.f32.mrf.mxu0
    %v299 = vadd.f32 %v210, %v298
    %v300 = vpop.f32.mrf.mxu0
    %v301 = vpop.f32.mrf.mxu0
    %v302 = vadd.f32 %v210, %v301
    %v303 = vpop.f32.mrf.mxu0
    %304 = vmatprep.mubr.bf16.mxu0 0
    %305 = vmatmul.mubr.bf16.gmra.mxu0 %v251
    %v306 = vpop.f32.mrf.mxu0
    %v307 = vadd.f32 %v210, %v306
    %v308 = vpop.f32.mrf.mxu0
    %v309 = vpop.f32.mrf.mxu0
    %v310 = vadd.f32 %v210, %v309
    %v311 = vpop.f32.mrf.mxu0
    %312 = vmatprep.mubr.bf16.mxu0 0
    %313 = vmatmul.mubr.bf16.gmra.mxu0 %v254
    %v314 = vpop.f32.mrf.mxu0
    %v315 = vadd.f32 %v210, %v314
    %v316 = vpop.f32.mrf.mxu0
    %v317 = vpop.f32.mrf.mxu0
    %v318 = vadd.f32 %v210, %v317
    %v319 = vpop.f32.mrf.mxu0
    %320 = vdwg.mxu0
    %321 = vst [vmem:[#allocation5] sm:$0xff] %v291
    %322 = vst [vmem:[#allocation5 + $0x8] sm:$0xff] %v294
    %323 = vst [vmem:[#allocation5 + $0x10] sm:$0xff] %v299
    %324 = vst [vmem:[#allocation5 + $0x18] sm:$0xff] %v302
    %325 = vst [vmem:[#allocation5 + $0x20] sm:$0xff] %v307
    %326 = vst [vmem:[#allocation5 + $0x28] sm:$0xff] %v310
    %327 = vst [vmem:[#allocation5 + $0x30] sm:$0xff] %v315
    %328 = vst [vmem:[#allocation5 + $0x38] sm:$0xff] %v318
    %v329 = vld [vmem:[%s1] sm:$0xff]
    %v330 = vld [vmem:[%s3] sm:$0xf]
    %v331 = vld [vmem:[%s3 + $0x4] sm:$0xf]
    %v332 = vld [vmem:[%s3 + $0x8] sm:$0xf]
    %v333 = vld [vmem:[%s3 + $0xc] sm:$0xf]
    %v334 = vld [vmem:[%s6] sm:$0xf]
    %v335 = vld [vmem:[%s6 + $0x4] sm:$0xf]
    %v336 = vld [vmem:[%s6 + $0x8] sm:$0xf]
    %v337 = vld [vmem:[%s6 + $0xc] sm:$0xf]
    %v338 = vld [vmem:[#allocation9] sm:$0xff]
    %v339 = vld [vmem:[#allocation2] sm:$0xff]
    %v340 = vld [vmem:[#allocation10] sm:$0xff]
    %v341 = vld [vmem:[#allocation3] sm:$0xff]
    %s342 = ssub.s32 7, %s46
    %v343 = vld [vmem:[#allocation4] sm:$0xff]
    %v344 = vpack.c.bf16 %v338, %v338
    %v349 = vunpack.c.l.b16 %v330
    %v350 = vunpack.c.l.b16 %v331
    %v351 = vunpack.c.l.b16 %v332
    %v352 = vunpack.c.l.b16 %v333
    %v353 = vpack.c.b16 %v350, %v349
    %v354 = vpack.c.b16 %v352, %v351
    %v358 = vsel %vm107, %v344, 0
    %360 = vmatprep.subr.bf16.mxu0 0
    %361 = vmatpush1.bf16.msra.mxu0 0
    %362 = vmatprep.subr.bf16.mxu0 0
    %363 = vmatpush1.bf16.msra.mxu0 0
    %364 = vmatprep.subr.bf16.mxu0 0
    %365 = vmatpush1.bf16.msra.mxu0 0
    %366 = vmatprep.subr.bf16.mxu0 0
    %367 = vmatpush1.bf16.msra.mxu0 0
    %368 = vmatprep.subr.bf16.mxu0 0
    %369 = vmatpush1.bf16.msra.mxu0 0
    %370 = vmatprep.subr.bf16.mxu0 0
    %371 = vmatpush1.bf16.msra.mxu0 0
    %372 = vmatprep.subr.bf16.mxu0 0
    %373 = vmatpush1.bf16.msra.mxu0 %v354
    %374 = vmatprep.subr.bf16.mxu0 0
    %375 = vmatpush1.bf16.msra.mxu0 %v353
    %376 = vmatprep.subr.bf16.mxu0 0
    %377 = vmatpush2.bf16.msra.mxu0 0
    %378 = vmatprep.subr.bf16.mxu0 0
    %379 = vmatpush2.bf16.msra.mxu0 0
    %380 = vmatprep.subr.bf16.mxu0 0
    %381 = vmatpush2.bf16.msra.mxu0 0
    %382 = vmatprep.subr.bf16.mxu0 0
    %383 = vmatpush2.bf16.msra.mxu0 0
    %384 = vmatprep.subr.bf16.mxu0 0
    %385 = vmatpush2.bf16.msra.mxu0 0
    %386 = vmatprep.subr.bf16.mxu0 0
    %387 = vmatpush2.bf16.msra.mxu0 0
    %388 = vmatprep.subr.bf16.mxu0 0
    %389 = vmatpush2.bf16.msra.mxu0 0
    %390 = vmatprep.subr.bf16.mxu0 0
    %391 = vmatpush2.bf16.msra.mxu0 0
    %392 = vmatprep.mubr.bf16.mxu0 0
    %393 = vmatmul.mubr.bf16.gmra.mxu0 %v358
    %v394 = vpop.f32.mrf.mxu0
    %v395 = vadd.f32 0.0, %v394
    %v396 = vpop.f32.mrf.mxu0
    %v397 = vpop.f32.mrf.mxu0
    %v398 = vpop.f32.mrf.mxu0
    %399 = vdwg.mxu0
    %v400 = vadd.f32 %v343, %v395
    %v401 = vxor.u32 %v400, 2147483648
    %v402 = vmul.f32 %v401, 1.442695
    %v403 = vpow.pop %v402
    %v404 = vadd.f32 %v403, 1.0
    %v405 = vrcp.pop %v404
    %v406 = vmul.f32 1.0, %v405
    %v407 = vtanh.pop %v400
    %409 = vrot.lane.b32.xlu0 %v339, 32
    %v410 = vpop.permute.xlu0 %409
    %v412 = vmul.f32 %v406, %v410
    %414 = vrot.lane.b32.xlu0 %v407, 32
    %v415 = vpop.permute.xlu0 %414
    %v417 = vmul.f32 %v406, %v415
    %419 = vrot.lane.b32.xlu0 %v417, 32
    %v420 = vpop.permute.xlu0 %419
    %v422 = vadd.f32 %v412, %v420
    %v423 = vtanh.pop %v422
    %425 = vrot.lane.b32.xlu0 %v423, 32
    %v426 = vpop.permute.xlu0 %425
    %v428 = vmul.f32 %v406, %v426
    %v429 = vstv %s46
    %vm430 = vcmp.lt.s32.totalorder %v429, %v329
    %v431 = vsel %vm430, 1, 0
    %432 = vset.pattern.permute.xlu0 0
    %433 = vperm.xlu0 %432, %v431
    %v434 = vpop.permute.xlu0 %433
    %vm435 = vcmp.eq.s32.totalorder %v434, 1
    %437 = vrot.lane.b32.xlu0 %v338, 64
    %v438 = vpop.permute.xlu0 %437
    %v440 = vsel %vm435, %v428, %v438
    %v441 = vsel %vm435, %v422, %v410
    %s442 = scalar_lea.vmem [#allocation5], 56
    %v443 = vld [vmem:[%s442] sm:$0xff]
    %v444 = vpack.c.bf16 %v340, %v340
    %v449 = vunpack.c.l.b16 %v334
    %v450 = vunpack.c.l.b16 %v335
    %v451 = vunpack.c.l.b16 %v336
    %v452 = vunpack.c.l.b16 %v337
    %v453 = vpack.c.b16 %v450, %v449
    %v454 = vpack.c.b16 %v452, %v451
    %v458 = vsel %vm107, %v444, 0
    %460 = vmatprep.subr.bf16.mxu0 0
    %461 = vmatpush1.bf16.msra.mxu0 0
    %462 = vmatprep.subr.bf16.mxu0 0
    %463 = vmatpush1.bf16.msra.mxu0 0
    %464 = vmatprep.subr.bf16.mxu0 0
    %465 = vmatpush1.bf16.msra.mxu0 0
    %466 = vmatprep.subr.bf16.mxu0 0
    %467 = vmatpush1.bf16.msra.mxu0 0
    %468 = vmatprep.subr.bf16.mxu0 0
    %469 = vmatpush1.bf16.msra.mxu0 0
    %470 = vmatprep.subr.bf16.mxu0 0
    %471 = vmatpush1.bf16.msra.mxu0 0
    %472 = vmatprep.subr.bf16.mxu0 0
    %473 = vmatpush1.bf16.msra.mxu0 %v454
    %474 = vmatprep.subr.bf16.mxu0 0
    %475 = vmatpush1.bf16.msra.mxu0 %v453
    %476 = vmatprep.subr.bf16.mxu0 0
    %477 = vmatpush2.bf16.msra.mxu0 0
    %478 = vmatprep.subr.bf16.mxu0 0
    %479 = vmatpush2.bf16.msra.mxu0 0
    %480 = vmatprep.subr.bf16.mxu0 0
    %481 = vmatpush2.bf16.msra.mxu0 0
    %482 = vmatprep.subr.bf16.mxu0 0
    %483 = vmatpush2.bf16.msra.mxu0 0
    %484 = vmatprep.subr.bf16.mxu0 0
    %485 = vmatpush2.bf16.msra.mxu0 0
    %486 = vmatprep.subr.bf16.mxu0 0
    %487 = vmatpush2.bf16.msra.mxu0 0
    %488 = vmatprep.subr.bf16.mxu0 0
    %489 = vmatpush2.bf16.msra.mxu0 0
    %490 = vmatprep.subr.bf16.mxu0 0
    %491 = vmatpush2.bf16.msra.mxu0 0
    %492 = vmatprep.mubr.bf16.mxu0 0
    %493 = vmatmul.mubr.bf16.gmra.mxu0 %v458
    %v494 = vpop.f32.mrf.mxu0
    %v495 = vadd.f32 0.0, %v494
    %v496 = vpop.f32.mrf.mxu0
    %v497 = vpop.f32.mrf.mxu0
    %v498 = vpop.f32.mrf.mxu0
    %499 = vdwg.mxu0
    %v500 = vadd.f32 %v443, %v495
    %v501 = vxor.u32 %v500, 2147483648
    %v502 = vmul.f32 %v501, 1.442695
    %v503 = vpow.pop %v502
    %v504 = vadd.f32 %v503, 1.0
    %v505 = vrcp.pop %v504
    %v506 = vmul.f32 1.0, %v505
    %v507 = vtanh.pop %v500
    %509 = vrot.lane.b32.xlu0 %v341, 32
    %v510 = vpop.permute.xlu0 %509
    %v512 = vmul.f32 %v506, %v510
    %514 = vrot.lane.b32.xlu0 %v507, 32
    %v515 = vpop.permute.xlu0 %514
    %v517 = vmul.f32 %v506, %v515
    %519 = vrot.lane.b32.xlu0 %v517, 32
    %v520 = vpop.permute.xlu0 %519
    %v522 = vadd.f32 %v512, %v520
    %v523 = vtanh.pop %v522
    %525 = vrot.lane.b32.xlu0 %v523, 32
    %v526 = vpop.permute.xlu0 %525
    %v528 = vmul.f32 %v506, %v526
    %v529 = vstv %s342
    %vm530 = vcmp.lt.s32.totalorder %v529, %v329
    %v531 = vsel %vm530, 1, 0
    %532 = vset.pattern.permute.xlu0 0
    %533 = vperm.xlu0 %532, %v531
    %v534 = vpop.permute.xlu0 %533
    %vm535 = vcmp.eq.s32.totalorder %v534, 1
    %537 = vrot.lane.b32.xlu0 %v340, 64
    %v538 = vpop.permute.xlu0 %537
    %v540 = vsel %vm535, %v528, %v538
    %v541 = vsel %vm535, %v522, %v510
    %s542 = sadd.s32 %s46, 1
    %s543 = ssub.s32 6, %s46
    %s544 = scalar_lea.vmem [#allocation4], 8
    %v545 = vld [vmem:[%s544] sm:$0xff]
    %v546 = vpack.c.bf16 %v440, %v440
    %548 = vrot.lane.b32.xlu0 %v546, 64
    %v549 = vpop.permute.xlu0 %548
    %v551 = vsel %vm107, %v549, 0
    %553 = vmatprep.subr.bf16.mxu0 0
    %554 = vmatpush1.bf16.msra.mxu0 0
    %555 = vmatprep.subr.bf16.mxu0 0
    %556 = vmatpush1.bf16.msra.mxu0 0
    %557 = vmatprep.subr.bf16.mxu0 0
    %558 = vmatpush1.bf16.msra.mxu0 0
    %559 = vmatprep.subr.bf16.mxu0 0
    %560 = vmatpush1.bf16.msra.mxu0 0
    %561 = vmatprep.subr.bf16.mxu0 0
    %562 = vmatpush1.bf16.msra.mxu0 0
    %563 = vmatprep.subr.bf16.mxu0 0
    %564 = vmatpush1.bf16.msra.mxu0 0
    %565 = vmatprep.subr.bf16.mxu0 0
    %566 = vmatpush1.bf16.msra.mxu0 %v354
    %567 = vmatprep.subr.bf16.mxu0 0
    %568 = vmatpush1.bf16.msra.mxu0 %v353
    %569 = vmatprep.subr.bf16.mxu0 0
    %570 = vmatpush2.bf16.msra.mxu0 0
    %571 = vmatprep.subr.bf16.mxu0 0
    %572 = vmatpush2.bf16.msra.mxu0 0
    %573 = vmatprep.subr.bf16.mxu0 0
    %574 = vmatpush2.bf16.msra.mxu0 0
    %575 = vmatprep.subr.bf16.mxu0 0
    %576 = vmatpush2.bf16.msra.mxu0 0
    %577 = vmatprep.subr.bf16.mxu0 0
    %578 = vmatpush2.bf16.msra.mxu0 0
    %579 = vmatprep.subr.bf16.mxu0 0
    %580 = vmatpush2.bf16.msra.mxu0 0
    %581 = vmatprep.subr.bf16.mxu0 0
    %582 = vmatpush2.bf16.msra.mxu0 0
    %583 = vmatprep.subr.bf16.mxu0 0
    %584 = vmatpush2.bf16.msra.mxu0 0
    %585 = vmatprep.mubr.bf16.mxu0 0
    %586 = vmatmul.mubr.bf16.gmra.mxu0 %v551
    %v587 = vpop.f32.mrf.mxu0
    %v588 = vadd.f32 0.0, %v587
    %v589 = vpop.f32.mrf.mxu0
    %v590 = vpop.f32.mrf.mxu0
    %v591 = vpop.f32.mrf.mxu0
    %592 = vdwg.mxu0
    %v593 = vadd.f32 %v545, %v588
    %v594 = vxor.u32 %v593, 2147483648
    %v595 = vmul.f32 %v594, 1.442695
    %v596 = vpow.pop %v595
    %v597 = vadd.f32 %v596, 1.0
    %v598 = vrcp.pop %v597
    %v599 = vmul.f32 1.0, %v598
    %v600 = vtanh.pop %v593
    %v601 = vmul.f32 %v599, %v441
    %603 = vrot.lane.b32.xlu0 %v600, 32
    %v604 = vpop.permute.xlu0 %603
    %v606 = vmul.f32 %v599, %v604
    %608 = vrot.lane.b32.xlu0 %v606, 32
    %v609 = vpop.permute.xlu0 %608
    %v611 = vadd.f32 %v601, %v609
    %v612 = vtanh.pop %v611
    %614 = vrot.lane.b32.xlu0 %v612, 32
    %v615 = vpop.permute.xlu0 %614
    %v617 = vmul.f32 %v599, %v615
    %v618 = vstv %s542
    %vm619 = vcmp.lt.s32.totalorder %v618, %v329
    %v620 = vsel %vm619, 1, 0
    %621 = vset.pattern.permute.xlu0 0
    %622 = vperm.xlu0 %621, %v620
    %v623 = vpop.permute.xlu0 %622
    %vm624 = vcmp.eq.s32.totalorder %v623, 1
    %v625 = vsel %vm624, %v617, %v440
    %v626 = vsel %vm624, %v611, %v441
    %s627 = scalar_lea.vmem [#allocation5], 48
    %v628 = vld [vmem:[%s627] sm:$0xff]
    %v629 = vpack.c.bf16 %v540, %v540
    %631 = vrot.lane.b32.xlu0 %v629, 64
    %v632 = vpop.permute.xlu0 %631
    %v634 = vsel %vm107, %v632, 0
    %636 = vmatprep.subr.bf16.mxu0 0
    %637 = vmatpush1.bf16.msra.mxu0 0
    %638 = vmatprep.subr.bf16.mxu0 0
    %639 = vmatpush1.bf16.msra.mxu0 0
    %640 = vmatprep.subr.bf16.mxu0 0
    %641 = vmatpush1.bf16.msra.mxu0 0
    %642 = vmatprep.subr.bf16.mxu0 0
    %643 = vmatpush1.bf16.msra.mxu0 0
    %644 = vmatprep.subr.bf16.mxu0 0
    %645 = vmatpush1.bf16.msra.mxu0 0
    %646 = vmatprep.subr.bf16.mxu0 0
    %647 = vmatpush1.bf16.msra.mxu0 0
    %648 = vmatprep.subr.bf16.mxu0 0
    %649 = vmatpush1.bf16.msra.mxu0 %v454
    %650 = vmatprep.subr.bf16.mxu0 0
    %651 = vmatpush1.bf16.msra.mxu0 %v453
    %652 = vmatprep.subr.bf16.mxu0 0
    %653 = vmatpush2.bf16.msra.mxu0 0
    %654 = vmatprep.subr.bf16.mxu0 0
    %655 = vmatpush2.bf16.msra.mxu0 0
    %656 = vmatprep.subr.bf16.mxu0 0
    %657 = vmatpush2.bf16.msra.mxu0 0
    %658 = vmatprep.subr.bf16.mxu0 0
    %659 = vmatpush2.bf16.msra.mxu0 0
    %660 = vmatprep.subr.bf16.mxu0 0
    %661 = vmatpush2.bf16.msra.mxu0 0
    %662 = vmatprep.subr.bf16.mxu0 0
    %663 = vmatpush2.bf16.msra.mxu0 0
    %664 = vmatprep.subr.bf16.mxu0 0
    %665 = vmatpush2.bf16.msra.mxu0 0
    %666 = vmatprep.subr.bf16.mxu0 0
    %667 = vmatpush2.bf16.msra.mxu0 0
    %668 = vmatprep.mubr.bf16.mxu0 0
    %669 = vmatmul.mubr.bf16.gmra.mxu0 %v634
    %v670 = vpop.f32.mrf.mxu0
    %v671 = vadd.f32 0.0, %v670
    %v672 = vpop.f32.mrf.mxu0
    %v673 = vpop.f32.mrf.mxu0
    %v674 = vpop.f32.mrf.mxu0
    %675 = vdwg.mxu0
    %v676 = vadd.f32 %v628, %v671
    %v677 = vxor.u32 %v676, 2147483648
    %v678 = vmul.f32 %v677, 1.442695
    %v679 = vpow.pop %v678
    %v680 = vadd.f32 %v679, 1.0
    %v681 = vrcp.pop %v680
    %v682 = vmul.f32 1.0, %v681
    %v683 = vtanh.pop %v676
    %v684 = vmul.f32 %v682, %v541
    %686 = vrot.lane.b32.xlu0 %v683, 32
    %v687 = vpop.permute.xlu0 %686
    %v689 = vmul.f32 %v682, %v687
    %691 = vrot.lane.b32.xlu0 %v689, 32
    %v692 = vpop.permute.xlu0 %691
    %v694 = vadd.f32 %v684, %v692
    %v695 = vtanh.pop %v694
    %697 = vrot.lane.b32.xlu0 %v695, 32
    %v698 = vpop.permute.xlu0 %697
    %v700 = vmul.f32 %v682, %v698
    %v701 = vstv %s543
    %vm702 = vcmp.lt.s32.totalorder %v701, %v329
    %v703 = vsel %vm702, 1, 0
    %704 = vset.pattern.permute.xlu0 0
    %705 = vperm.xlu0 %704, %v703
    %v706 = vpop.permute.xlu0 %705
    %vm707 = vcmp.eq.s32.totalorder %v706, 1
    %v708 = vsel %vm707, %v700, %v540
    %v709 = vsel %vm707, %v694, %v541
    %s710 = sadd.s32 %s46, 2
    %s711 = ssub.s32 5, %s46
    %s712 = scalar_lea.vmem [#allocation4], 16
    %v713 = vld [vmem:[%s712] sm:$0xff]
    %v714 = vpack.c.bf16 %v625, %v625
    %716 = vrot.lane.b32.xlu0 %v714, 64
    %v717 = vpop.permute.xlu0 %716
    %v719 = vsel %vm107, %v717, 0
    %721 = vmatprep.subr.bf16.mxu0 0
    %722 = vmatpush1.bf16.msra.mxu0 0
    %723 = vmatprep.subr.bf16.mxu0 0
    %724 = vmatpush1.bf16.msra.mxu0 0
    %725 = vmatprep.subr.bf16.mxu0 0
    %726 = vmatpush1.bf16.msra.mxu0 0
    %727 = vmatprep.subr.bf16.mxu0 0
    %728 = vmatpush1.bf16.msra.mxu0 0
    %729 = vmatprep.subr.bf16.mxu0 0
    %730 = vmatpush1.bf16.msra.mxu0 0
    %731 = vmatprep.subr.bf16.mxu0 0
    %732 = vmatpush1.bf16.msra.mxu0 0
    %733 = vmatprep.subr.bf16.mxu0 0
    %734 = vmatpush1.bf16.msra.mxu0 %v354
    %735 = vmatprep.subr.bf16.mxu0 0
    %736 = vmatpush1.bf16.msra.mxu0 %v353
    %737 = vmatprep.subr.bf16.mxu0 0
    %738 = vmatpush2.bf16.msra.mxu0 0
    %739 = vmatprep.subr.bf16.mxu0 0
    %740 = vmatpush2.bf16.msra.mxu0 0
    %741 = vmatprep.subr.bf16.mxu0 0
    %742 = vmatpush2.bf16.msra.mxu0 0
    %743 = vmatprep.subr.bf16.mxu0 0
    %744 = vmatpush2.bf16.msra.mxu0 0
    %745 = vmatprep.subr.bf16.mxu0 0
    %746 = vmatpush2.bf16.msra.mxu0 0
    %747 = vmatprep.subr.bf16.mxu0 0
    %748 = vmatpush2.bf16.msra.mxu0 0
    %749 = vmatprep.subr.bf16.mxu0 0
    %750 = vmatpush2.bf16.msra.mxu0 0
    %751 = vmatprep.subr.bf16.mxu0 0
    %752 = vmatpush2.bf16.msra.mxu0 0
    %753 = vmatprep.mubr.bf16.mxu0 0
    %754 = vmatmul.mubr.bf16.gmra.mxu0 %v719
    %v755 = vpop.f32.mrf.mxu0
    %v756 = vadd.f32 0.0, %v755
    %v757 = vpop.f32.mrf.mxu0
    %v758 = vpop.f32.mrf.mxu0
    %v759 = vpop.f32.mrf.mxu0
    %760 = vdwg.mxu0
    %v761 = vadd.f32 %v713, %v756
    %v762 = vxor.u32 %v761, 2147483648
    %v763 = vmul.f32 %v762, 1.442695
    %v764 = vpow.pop %v763
    %v765 = vadd.f32 %v764, 1.0
    %v766 = vrcp.pop %v765
    %v767 = vmul.f32 1.0, %v766
    %v768 = vtanh.pop %v761
    %v769 = vmul.f32 %v767, %v626
    %771 = vrot.lane.b32.xlu0 %v768, 32
    %v772 = vpop.permute.xlu0 %771
    %v774 = vmul.f32 %v767, %v772
    %776 = vrot.lane.b32.xlu0 %v774, 32
    %v777 = vpop.permute.xlu0 %776
    %v779 = vadd.f32 %v769, %v777
    %v780 = vtanh.pop %v779
    %782 = vrot.lane.b32.xlu0 %v780, 32
    %v783 = vpop.permute.xlu0 %782
    %v785 = vmul.f32 %v767, %v783
    %v786 = vstv %s710
    %vm787 = vcmp.lt.s32.totalorder %v786, %v329
    %v788 = vsel %vm787, 1, 0
    %789 = vset.pattern.permute.xlu0 0
    %790 = vperm.xlu0 %789, %v788
    %v791 = vpop.permute.xlu0 %790
    %vm792 = vcmp.eq.s32.totalorder %v791, 1
    %v793 = vsel %vm792, %v785, %v625
    %v794 = vsel %vm792, %v779, %v626
    %s795 = scalar_lea.vmem [#allocation5], 40
    %v796 = vld [vmem:[%s795] sm:$0xff]
    %v797 = vpack.c.bf16 %v708, %v708
    %799 = vrot.lane.b32.xlu0 %v797, 64
    %v800 = vpop.permute.xlu0 %799
    %v802 = vsel %vm107, %v800, 0
    %804 = vmatprep.subr.bf16.mxu0 0
    %805 = vmatpush1.bf16.msra.mxu0 0
    %806 = vmatprep.subr.bf16.mxu0 0
    %807 = vmatpush1.bf16.msra.mxu0 0
    %808 = vmatprep.subr.bf16.mxu0 0
    %809 = vmatpush1.bf16.msra.mxu0 0
    %810 = vmatprep.subr.bf16.mxu0 0
    %811 = vmatpush1.bf16.msra.mxu0 0
    %812 = vmatprep.subr.bf16.mxu0 0
    %813 = vmatpush1.bf16.msra.mxu0 0
    %814 = vmatprep.subr.bf16.mxu0 0
    %815 = vmatpush1.bf16.msra.mxu0 0
    %816 = vmatprep.subr.bf16.mxu0 0
    %817 = vmatpush1.bf16.msra.mxu0 %v454
    %818 = vmatprep.subr.bf16.mxu0 0
    %819 = vmatpush1.bf16.msra.mxu0 %v453
    %820 = vmatprep.subr.bf16.mxu0 0
    %821 = vmatpush2.bf16.msra.mxu0 0
    %822 = vmatprep.subr.bf16.mxu0 0
    %823 = vmatpush2.bf16.msra.mxu0 0
    %824 = vmatprep.subr.bf16.mxu0 0
    %825 = vmatpush2.bf16.msra.mxu0 0
    %826 = vmatprep.subr.bf16.mxu0 0
    %827 = vmatpush2.bf16.msra.mxu0 0
    %828 = vmatprep.subr.bf16.mxu0 0
    %829 = vmatpush2.bf16.msra.mxu0 0
    %830 = vmatprep.subr.bf16.mxu0 0
    %831 = vmatpush2.bf16.msra.mxu0 0
    %832 = vmatprep.subr.bf16.mxu0 0
    %833 = vmatpush2.bf16.msra.mxu0 0
    %834 = vmatprep.subr.bf16.mxu0 0
    %835 = vmatpush2.bf16.msra.mxu0 0
    %836 = vmatprep.mubr.bf16.mxu0 0
    %837 = vmatmul.mubr.bf16.gmra.mxu0 %v802
    %v838 = vpop.f32.mrf.mxu0
    %v839 = vadd.f32 0.0, %v838
    %v840 = vpop.f32.mrf.mxu0
    %v841 = vpop.f32.mrf.mxu0
    %v842 = vpop.f32.mrf.mxu0
    %843 = vdwg.mxu0
    %v844 = vadd.f32 %v796, %v839
    %v845 = vxor.u32 %v844, 2147483648
    %v846 = vmul.f32 %v845, 1.442695
    %v847 = vpow.pop %v846
    %v848 = vadd.f32 %v847, 1.0
    %v849 = vrcp.pop %v848
    %v850 = vmul.f32 1.0, %v849
    %v851 = vtanh.pop %v844
    %v852 = vmul.f32 %v850, %v709
    %854 = vrot.lane.b32.xlu0 %v851, 32
    %v855 = vpop.permute.xlu0 %854
    %v857 = vmul.f32 %v850, %v855
    %859 = vrot.lane.b32.xlu0 %v857, 32
    %v860 = vpop.permute.xlu0 %859
    %v862 = vadd.f32 %v852, %v860
    %v863 = vtanh.pop %v862
    %865 = vrot.lane.b32.xlu0 %v863, 32
    %v866 = vpop.permute.xlu0 %865
    %v868 = vmul.f32 %v850, %v866
    %v869 = vstv %s711
    %vm870 = vcmp.lt.s32.totalorder %v869, %v329
    %v871 = vsel %vm870, 1, 0
    %872 = vset.pattern.permute.xlu0 0
    %873 = vperm.xlu0 %872, %v871
    %v874 = vpop.permute.xlu0 %873
    %vm875 = vcmp.eq.s32.totalorder %v874, 1
    %v876 = vsel %vm875, %v868, %v708
    %v877 = vsel %vm875, %v862, %v709
    %s878 = sadd.s32 %s46, 3
    %s879 = ssub.s32 4, %s46
    %s880 = scalar_lea.vmem [#allocation4], 24
    %v881 = vld [vmem:[%s880] sm:$0xff]
    %v882 = vpack.c.bf16 %v793, %v793
    %884 = vrot.lane.b32.xlu0 %v882, 64
    %v885 = vpop.permute.xlu0 %884
    %v887 = vsel %vm107, %v885, 0
    %889 = vmatprep.subr.bf16.mxu0 0
    %890 = vmatpush1.bf16.msra.mxu0 0
    %891 = vmatprep.subr.bf16.mxu0 0
    %892 = vmatpush1.bf16.msra.mxu0 0
    %893 = vmatprep.subr.bf16.mxu0 0
    %894 = vmatpush1.bf16.msra.mxu0 0
    %895 = vmatprep.subr.bf16.mxu0 0
    %896 = vmatpush1.bf16.msra.mxu0 0
    %897 = vmatprep.subr.bf16.mxu0 0
    %898 = vmatpush1.bf16.msra.mxu0 0
    %899 = vmatprep.subr.bf16.mxu0 0
    %900 = vmatpush1.bf16.msra.mxu0 0
    %901 = vmatprep.subr.bf16.mxu0 0
    %902 = vmatpush1.bf16.msra.mxu0 %v354
    %903 = vmatprep.subr.bf16.mxu0 0
    %904 = vmatpush1.bf16.msra.mxu0 %v353
    %905 = vmatprep.subr.bf16.mxu0 0
    %906 = vmatpush2.bf16.msra.mxu0 0
    %907 = vmatprep.subr.bf16.mxu0 0
    %908 = vmatpush2.bf16.msra.mxu0 0
    %909 = vmatprep.subr.bf16.mxu0 0
    %910 = vmatpush2.bf16.msra.mxu0 0
    %911 = vmatprep.subr.bf16.mxu0 0
    %912 = vmatpush2.bf16.msra.mxu0 0
    %913 = vmatprep.subr.bf16.mxu0 0
    %914 = vmatpush2.bf16.msra.mxu0 0
    %915 = vmatprep.subr.bf16.mxu0 0
    %916 = vmatpush2.bf16.msra.mxu0 0
    %917 = vmatprep.subr.bf16.mxu0 0
    %918 = vmatpush2.bf16.msra.mxu0 0
    %919 = vmatprep.subr.bf16.mxu0 0
    %920 = vmatpush2.bf16.msra.mxu0 0
    %921 = vmatprep.mubr.bf16.mxu0 0
    %922 = vmatmul.mubr.bf16.gmra.mxu0 %v887
    %v923 = vpop.f32.mrf.mxu0
    %v924 = vadd.f32 0.0, %v923
    %v925 = vpop.f32.mrf.mxu0
    %v926 = vpop.f32.mrf.mxu0
    %v927 = vpop.f32.mrf.mxu0
    %928 = vdwg.mxu0
    %v929 = vadd.f32 %v881, %v924
    %v930 = vxor.u32 %v929, 2147483648
    %v931 = vmul.f32 %v930, 1.442695
    %v932 = vpow.pop %v931
    %v933 = vadd.f32 %v932, 1.0
    %v934 = vrcp.pop %v933
    %v935 = vmul.f32 1.0, %v934
    %v936 = vtanh.pop %v929
    %v937 = vmul.f32 %v935, %v794
    %939 = vrot.lane.b32.xlu0 %v936, 32
    %v940 = vpop.permute.xlu0 %939
    %v942 = vmul.f32 %v935, %v940
    %944 = vrot.lane.b32.xlu0 %v942, 32
    %v945 = vpop.permute.xlu0 %944
    %v947 = vadd.f32 %v937, %v945
    %v948 = vtanh.pop %v947
    %950 = vrot.lane.b32.xlu0 %v948, 32
    %v951 = vpop.permute.xlu0 %950
    %v953 = vmul.f32 %v935, %v951
    %v954 = vstv %s878
    %vm955 = vcmp.lt.s32.totalorder %v954, %v329
    %v956 = vsel %vm955, 1, 0
    %957 = vset.pattern.permute.xlu0 0
    %958 = vperm.xlu0 %957, %v956
    %v959 = vpop.permute.xlu0 %958
    %vm960 = vcmp.eq.s32.totalorder %v959, 1
    %v961 = vsel %vm960, %v953, %v793
    %v962 = vsel %vm960, %v947, %v794
    %s963 = scalar_lea.vmem [#allocation5], 32
    %v964 = vld [vmem:[%s963] sm:$0xff]
    %v965 = vpack.c.bf16 %v876, %v876
    %967 = vrot.lane.b32.xlu0 %v965, 64
    %v968 = vpop.permute.xlu0 %967
    %v970 = vsel %vm107, %v968, 0
    %972 = vmatprep.subr.bf16.mxu0 0
    %973 = vmatpush1.bf16.msra.mxu0 0
    %974 = vmatprep.subr.bf16.mxu0 0
    %975 = vmatpush1.bf16.msra.mxu0 0
    %976 = vmatprep.subr.bf16.mxu0 0
    %977 = vmatpush1.bf16.msra.mxu0 0
    %978 = vmatprep.subr.bf16.mxu0 0
    %979 = vmatpush1.bf16.msra.mxu0 0
    %980 = vmatprep.subr.bf16.mxu0 0
    %981 = vmatpush1.bf16.msra.mxu0 0
    %982 = vmatprep.subr.bf16.mxu0 0
    %983 = vmatpush1.bf16.msra.mxu0 0
    %984 = vmatprep.subr.bf16.mxu0 0
    %985 = vmatpush1.bf16.msra.mxu0 %v454
    %986 = vmatprep.subr.bf16.mxu0 0
    %987 = vmatpush1.bf16.msra.mxu0 %v453
    %988 = vmatprep.subr.bf16.mxu0 0
    %989 = vmatpush2.bf16.msra.mxu0 0
    %990 = vmatprep.subr.bf16.mxu0 0
    %991 = vmatpush2.bf16.msra.mxu0 0
    %992 = vmatprep.subr.bf16.mxu0 0
    %993 = vmatpush2.bf16.msra.mxu0 0
    %994 = vmatprep.subr.bf16.mxu0 0
    %995 = vmatpush2.bf16.msra.mxu0 0
    %996 = vmatprep.subr.bf16.mxu0 0
    %997 = vmatpush2.bf16.msra.mxu0 0
    %998 = vmatprep.subr.bf16.mxu0 0
    %999 = vmatpush2.bf16.msra.mxu0 0
    %1000 = vmatprep.subr.bf16.mxu0 0
    %1001 = vmatpush2.bf16.msra.mxu0 0
    %1002 = vmatprep.subr.bf16.mxu0 0
    %1003 = vmatpush2.bf16.msra.mxu0 0
    %1004 = vmatprep.mubr.bf16.mxu0 0
    %1005 = vmatmul.mubr.bf16.gmra.mxu0 %v970
    %v1006 = vpop.f32.mrf.mxu0
    %v1007 = vadd.f32 0.0, %v1006
    %v1008 = vpop.f32.mrf.mxu0
    %v1009 = vpop.f32.mrf.mxu0
    %v1010 = vpop.f32.mrf.mxu0
    %1011 = vdwg.mxu0
    %v1012 = vadd.f32 %v964, %v1007
    %v1013 = vxor.u32 %v1012, 2147483648
    %v1014 = vmul.f32 %v1013, 1.442695
    %v1015 = vpow.pop %v1014
    %v1016 = vadd.f32 %v1015, 1.0
    %v1017 = vrcp.pop %v1016
    %v1018 = vmul.f32 1.0, %v1017
    %v1019 = vtanh.pop %v1012
    %v1020 = vmul.f32 %v1018, %v877
    %1022 = vrot.lane.b32.xlu0 %v1019, 32
    %v1023 = vpop.permute.xlu0 %1022
    %v1025 = vmul.f32 %v1018, %v1023
    %1027 = vrot.lane.b32.xlu0 %v1025, 32
    %v1028 = vpop.permute.xlu0 %1027
    %v1030 = vadd.f32 %v1020, %v1028
    %v1031 = vtanh.pop %v1030
    %1033 = vrot.lane.b32.xlu0 %v1031, 32
    %v1034 = vpop.permute.xlu0 %1033
    %v1036 = vmul.f32 %v1018, %v1034
    %v1037 = vstv %s879
    %vm1038 = vcmp.lt.s32.totalorder %v1037, %v329
    %v1039 = vsel %vm1038, 1, 0
    %1040 = vset.pattern.permute.xlu0 0
    %1041 = vperm.xlu0 %1040, %v1039
    %v1042 = vpop.permute.xlu0 %1041
    %vm1043 = vcmp.eq.s32.totalorder %v1042, 1
    %v1044 = vsel %vm1043, %v1036, %v876
    %v1045 = vsel %vm1043, %v1030, %v877
    %s1046 = sadd.s32 %s46, 4
    %s1047 = ssub.s32 3, %s46
    %s1048 = scalar_lea.vmem [#allocation4], 32
    %v1049 = vld [vmem:[%s1048] sm:$0xff]
    %v1050 = vpack.c.bf16 %v961, %v961
    %1052 = vrot.lane.b32.xlu0 %v1050, 64
    %v1053 = vpop.permute.xlu0 %1052
    %v1055 = vsel %vm107, %v1053, 0
    %1057 = vmatprep.subr.bf16.mxu0 0
    %1058 = vmatpush1.bf16.msra.mxu0 0
    %1059 = vmatprep.subr.bf16.mxu0 0
    %1060 = vmatpush1.bf16.msra.mxu0 0
    %1061 = vmatprep.subr.bf16.mxu0 0
    %1062 = vmatpush1.bf16.msra.mxu0 0
    %1063 = vmatprep.subr.bf16.mxu0 0
    %1064 = vmatpush1.bf16.msra.mxu0 0
    %1065 = vmatprep.subr.bf16.mxu0 0
    %1066 = vmatpush1.bf16.msra.mxu0 0
    %1067 = vmatprep.subr.bf16.mxu0 0
    %1068 = vmatpush1.bf16.msra.mxu0 0
    %1069 = vmatprep.subr.bf16.mxu0 0
    %1070 = vmatpush1.bf16.msra.mxu0 %v354
    %1071 = vmatprep.subr.bf16.mxu0 0
    %1072 = vmatpush1.bf16.msra.mxu0 %v353
    %1073 = vmatprep.subr.bf16.mxu0 0
    %1074 = vmatpush2.bf16.msra.mxu0 0
    %1075 = vmatprep.subr.bf16.mxu0 0
    %1076 = vmatpush2.bf16.msra.mxu0 0
    %1077 = vmatprep.subr.bf16.mxu0 0
    %1078 = vmatpush2.bf16.msra.mxu0 0
    %1079 = vmatprep.subr.bf16.mxu0 0
    %1080 = vmatpush2.bf16.msra.mxu0 0
    %1081 = vmatprep.subr.bf16.mxu0 0
    %1082 = vmatpush2.bf16.msra.mxu0 0
    %1083 = vmatprep.subr.bf16.mxu0 0
    %1084 = vmatpush2.bf16.msra.mxu0 0
    %1085 = vmatprep.subr.bf16.mxu0 0
    %1086 = vmatpush2.bf16.msra.mxu0 0
    %1087 = vmatprep.subr.bf16.mxu0 0
    %1088 = vmatpush2.bf16.msra.mxu0 0
    %1089 = vmatprep.mubr.bf16.mxu0 0
    %1090 = vmatmul.mubr.bf16.gmra.mxu0 %v1055
    %v1091 = vpop.f32.mrf.mxu0
    %v1092 = vadd.f32 0.0, %v1091
    %v1093 = vpop.f32.mrf.mxu0
    %v1094 = vpop.f32.mrf.mxu0
    %v1095 = vpop.f32.mrf.mxu0
    %1096 = vdwg.mxu0
    %v1097 = vadd.f32 %v1049, %v1092
    %v1098 = vxor.u32 %v1097, 2147483648
    %v1099 = vmul.f32 %v1098, 1.442695
    %v1100 = vpow.pop %v1099
    %v1101 = vadd.f32 %v1100, 1.0
    %v1102 = vrcp.pop %v1101
    %v1103 = vmul.f32 1.0, %v1102
    %v1104 = vtanh.pop %v1097
    %v1105 = vmul.f32 %v1103, %v962
    %1107 = vrot.lane.b32.xlu0 %v1104, 32
    %v1108 = vpop.permute.xlu0 %1107
    %v1110 = vmul.f32 %v1103, %v1108
    %1112 = vrot.lane.b32.xlu0 %v1110, 32
    %v1113 = vpop.permute.xlu0 %1112
    %v1115 = vadd.f32 %v1105, %v1113
    %v1116 = vtanh.pop %v1115
    %1118 = vrot.lane.b32.xlu0 %v1116, 32
    %v1119 = vpop.permute.xlu0 %1118
    %v1121 = vmul.f32 %v1103, %v1119
    %v1122 = vstv %s1046
    %vm1123 = vcmp.lt.s32.totalorder %v1122, %v329
    %v1124 = vsel %vm1123, 1, 0
    %1125 = vset.pattern.permute.xlu0 0
    %1126 = vperm.xlu0 %1125, %v1124
    %v1127 = vpop.permute.xlu0 %1126
    %vm1128 = vcmp.eq.s32.totalorder %v1127, 1
    %v1129 = vsel %vm1128, %v1121, %v961
    %v1130 = vsel %vm1128, %v1115, %v962
    %s1131 = scalar_lea.vmem [#allocation5], 24
    %v1132 = vld [vmem:[%s1131] sm:$0xff]
    %v1133 = vpack.c.bf16 %v1044, %v1044
    %1135 = vrot.lane.b32.xlu0 %v1133, 64
    %v1136 = vpop.permute.xlu0 %1135
    %v1138 = vsel %vm107, %v1136, 0
    %1140 = vmatprep.subr.bf16.mxu0 0
    %1141 = vmatpush1.bf16.msra.mxu0 0
    %1142 = vmatprep.subr.bf16.mxu0 0
    %1143 = vmatpush1.bf16.msra.mxu0 0
    %1144 = vmatprep.subr.bf16.mxu0 0
    %1145 = vmatpush1.bf16.msra.mxu0 0
    %1146 = vmatprep.subr.bf16.mxu0 0
    %1147 = vmatpush1.bf16.msra.mxu0 0
    %1148 = vmatprep.subr.bf16.mxu0 0
    %1149 = vmatpush1.bf16.msra.mxu0 0
    %1150 = vmatprep.subr.bf16.mxu0 0
    %1151 = vmatpush1.bf16.msra.mxu0 0
    %1152 = vmatprep.subr.bf16.mxu0 0
    %1153 = vmatpush1.bf16.msra.mxu0 %v454
    %1154 = vmatprep.subr.bf16.mxu0 0
    %1155 = vmatpush1.bf16.msra.mxu0 %v453
    %1156 = vmatprep.subr.bf16.mxu0 0
    %1157 = vmatpush2.bf16.msra.mxu0 0
    %1158 = vmatprep.subr.bf16.mxu0 0
    %1159 = vmatpush2.bf16.msra.mxu0 0
    %1160 = vmatprep.subr.bf16.mxu0 0
    %1161 = vmatpush2.bf16.msra.mxu0 0
    %1162 = vmatprep.subr.bf16.mxu0 0
    %1163 = vmatpush2.bf16.msra.mxu0 0
    %1164 = vmatprep.subr.bf16.mxu0 0
    %1165 = vmatpush2.bf16.msra.mxu0 0
    %1166 = vmatprep.subr.bf16.mxu0 0
    %1167 = vmatpush2.bf16.msra.mxu0 0
    %1168 = vmatprep.subr.bf16.mxu0 0
    %1169 = vmatpush2.bf16.msra.mxu0 0
    %1170 = vmatprep.subr.bf16.mxu0 0
    %1171 = vmatpush2.bf16.msra.mxu0 0
    %1172 = vmatprep.mubr.bf16.mxu0 0
    %1173 = vmatmul.mubr.bf16.gmra.mxu0 %v1138
    %v1174 = vpop.f32.mrf.mxu0
    %v1175 = vadd.f32 0.0, %v1174
    %v1176 = vpop.f32.mrf.mxu0
    %v1177 = vpop.f32.mrf.mxu0
    %v1178 = vpop.f32.mrf.mxu0
    %1179 = vdwg.mxu0
    %v1180 = vadd.f32 %v1132, %v1175
    %v1181 = vxor.u32 %v1180, 2147483648
    %v1182 = vmul.f32 %v1181, 1.442695
    %v1183 = vpow.pop %v1182
    %v1184 = vadd.f32 %v1183, 1.0
    %v1185 = vrcp.pop %v1184
    %v1186 = vmul.f32 1.0, %v1185
    %v1187 = vtanh.pop %v1180
    %v1188 = vmul.f32 %v1186, %v1045
    %1190 = vrot.lane.b32.xlu0 %v1187, 32
    %v1191 = vpop.permute.xlu0 %1190
    %v1193 = vmul.f32 %v1186, %v1191
    %1195 = vrot.lane.b32.xlu0 %v1193, 32
    %v1196 = vpop.permute.xlu0 %1195
    %v1198 = vadd.f32 %v1188, %v1196
    %v1199 = vtanh.pop %v1198
    %1201 = vrot.lane.b32.xlu0 %v1199, 32
    %v1202 = vpop.permute.xlu0 %1201
    %v1204 = vmul.f32 %v1186, %v1202
    %v1205 = vstv %s1047
    %vm1206 = vcmp.lt.s32.totalorder %v1205, %v329
    %v1207 = vsel %vm1206, 1, 0
    %1208 = vset.pattern.permute.xlu0 0
    %1209 = vperm.xlu0 %1208, %v1207
    %v1210 = vpop.permute.xlu0 %1209
    %vm1211 = vcmp.eq.s32.totalorder %v1210, 1
    %v1212 = vsel %vm1211, %v1204, %v1044
    %v1213 = vsel %vm1211, %v1198, %v1045
    %s1214 = sadd.s32 %s46, 5
    %s1215 = ssub.s32 2, %s46
    %s1216 = scalar_lea.vmem [#allocation4], 40
    %v1217 = vld [vmem:[%s1216] sm:$0xff]
    %v1218 = vpack.c.bf16 %v1129, %v1129
    %1220 = vrot.lane.b32.xlu0 %v1218, 64
    %v1221 = vpop.permute.xlu0 %1220
    %v1223 = vsel %vm107, %v1221, 0
    %1225 = vmatprep.subr.bf16.mxu0 0
    %1226 = vmatpush1.bf16.msra.mxu0 0
    %1227 = vmatprep.subr.bf16.mxu0 0
    %1228 = vmatpush1.bf16.msra.mxu0 0
    %1229 = vmatprep.subr.bf16.mxu0 0
    %1230 = vmatpush1.bf16.msra.mxu0 0
    %1231 = vmatprep.subr.bf16.mxu0 0
    %1232 = vmatpush1.bf16.msra.mxu0 0
    %1233 = vmatprep.subr.bf16.mxu0 0
    %1234 = vmatpush1.bf16.msra.mxu0 0
    %1235 = vmatprep.subr.bf16.mxu0 0
    %1236 = vmatpush1.bf16.msra.mxu0 0
    %1237 = vmatprep.subr.bf16.mxu0 0
    %1238 = vmatpush1.bf16.msra.mxu0 %v354
    %1239 = vmatprep.subr.bf16.mxu0 0
    %1240 = vmatpush1.bf16.msra.mxu0 %v353
    %1241 = vmatprep.subr.bf16.mxu0 0
    %1242 = vmatpush2.bf16.msra.mxu0 0
    %1243 = vmatprep.subr.bf16.mxu0 0
    %1244 = vmatpush2.bf16.msra.mxu0 0
    %1245 = vmatprep.subr.bf16.mxu0 0
    %1246 = vmatpush2.bf16.msra.mxu0 0
    %1247 = vmatprep.subr.bf16.mxu0 0
    %1248 = vmatpush2.bf16.msra.mxu0 0
    %1249 = vmatprep.subr.bf16.mxu0 0
    %1250 = vmatpush2.bf16.msra.mxu0 0
    %1251 = vmatprep.subr.bf16.mxu0 0
    %1252 = vmatpush2.bf16.msra.mxu0 0
    %1253 = vmatprep.subr.bf16.mxu0 0
    %1254 = vmatpush2.bf16.msra.mxu0 0
    %1255 = vmatprep.subr.bf16.mxu0 0
    %1256 = vmatpush2.bf16.msra.mxu0 0
    %1257 = vmatprep.mubr.bf16.mxu0 0
    %1258 = vmatmul.mubr.bf16.gmra.mxu0 %v1223
    %v1259 = vpop.f32.mrf.mxu0
    %v1260 = vadd.f32 0.0, %v1259
    %v1261 = vpop.f32.mrf.mxu0
    %v1262 = vpop.f32.mrf.mxu0
    %v1263 = vpop.f32.mrf.mxu0
    %1264 = vdwg.mxu0
    %v1265 = vadd.f32 %v1217, %v1260
    %v1266 = vxor.u32 %v1265, 2147483648
    %v1267 = vmul.f32 %v1266, 1.442695
    %v1268 = vpow.pop %v1267
    %v1269 = vadd.f32 %v1268, 1.0
    %v1270 = vrcp.pop %v1269
    %v1271 = vmul.f32 1.0, %v1270
    %v1272 = vtanh.pop %v1265
    %v1273 = vmul.f32 %v1271, %v1130
    %1275 = vrot.lane.b32.xlu0 %v1272, 32
    %v1276 = vpop.permute.xlu0 %1275
    %v1278 = vmul.f32 %v1271, %v1276
    %1280 = vrot.lane.b32.xlu0 %v1278, 32
    %v1281 = vpop.permute.xlu0 %1280
    %v1283 = vadd.f32 %v1273, %v1281
    %v1284 = vtanh.pop %v1283
    %1286 = vrot.lane.b32.xlu0 %v1284, 32
    %v1287 = vpop.permute.xlu0 %1286
    %v1289 = vmul.f32 %v1271, %v1287
    %v1290 = vstv %s1214
    %vm1291 = vcmp.lt.s32.totalorder %v1290, %v329
    %v1292 = vsel %vm1291, 1, 0
    %1293 = vset.pattern.permute.xlu0 0
    %1294 = vperm.xlu0 %1293, %v1292
    %v1295 = vpop.permute.xlu0 %1294
    %vm1296 = vcmp.eq.s32.totalorder %v1295, 1
    %v1297 = vsel %vm1296, %v1289, %v1129
    %v1298 = vsel %vm1296, %v1283, %v1130
    %s1299 = scalar_lea.vmem [#allocation5], 16
    %v1300 = vld [vmem:[%s1299] sm:$0xff]
    %v1301 = vpack.c.bf16 %v1212, %v1212
    %1303 = vrot.lane.b32.xlu0 %v1301, 64
    %v1304 = vpop.permute.xlu0 %1303
    %v1306 = vsel %vm107, %v1304, 0
    %1308 = vmatprep.subr.bf16.mxu0 0
    %1309 = vmatpush1.bf16.msra.mxu0 0
    %1310 = vmatprep.subr.bf16.mxu0 0
    %1311 = vmatpush1.bf16.msra.mxu0 0
    %1312 = vmatprep.subr.bf16.mxu0 0
    %1313 = vmatpush1.bf16.msra.mxu0 0
    %1314 = vmatprep.subr.bf16.mxu0 0
    %1315 = vmatpush1.bf16.msra.mxu0 0
    %1316 = vmatprep.subr.bf16.mxu0 0
    %1317 = vmatpush1.bf16.msra.mxu0 0
    %1318 = vmatprep.subr.bf16.mxu0 0
    %1319 = vmatpush1.bf16.msra.mxu0 0
    %1320 = vmatprep.subr.bf16.mxu0 0
    %1321 = vmatpush1.bf16.msra.mxu0 %v454
    %1322 = vmatprep.subr.bf16.mxu0 0
    %1323 = vmatpush1.bf16.msra.mxu0 %v453
    %1324 = vmatprep.subr.bf16.mxu0 0
    %1325 = vmatpush2.bf16.msra.mxu0 0
    %1326 = vmatprep.subr.bf16.mxu0 0
    %1327 = vmatpush2.bf16.msra.mxu0 0
    %1328 = vmatprep.subr.bf16.mxu0 0
    %1329 = vmatpush2.bf16.msra.mxu0 0
    %1330 = vmatprep.subr.bf16.mxu0 0
    %1331 = vmatpush2.bf16.msra.mxu0 0
    %1332 = vmatprep.subr.bf16.mxu0 0
    %1333 = vmatpush2.bf16.msra.mxu0 0
    %1334 = vmatprep.subr.bf16.mxu0 0
    %1335 = vmatpush2.bf16.msra.mxu0 0
    %1336 = vmatprep.subr.bf16.mxu0 0
    %1337 = vmatpush2.bf16.msra.mxu0 0
    %1338 = vmatprep.subr.bf16.mxu0 0
    %1339 = vmatpush2.bf16.msra.mxu0 0
    %1340 = vmatprep.mubr.bf16.mxu0 0
    %1341 = vmatmul.mubr.bf16.gmra.mxu0 %v1306
    %v1342 = vpop.f32.mrf.mxu0
    %v1343 = vadd.f32 0.0, %v1342
    %v1344 = vpop.f32.mrf.mxu0
    %v1345 = vpop.f32.mrf.mxu0
    %v1346 = vpop.f32.mrf.mxu0
    %1347 = vdwg.mxu0
    %v1348 = vadd.f32 %v1300, %v1343
    %v1349 = vxor.u32 %v1348, 2147483648
    %v1350 = vmul.f32 %v1349, 1.442695
    %v1351 = vpow.pop %v1350
    %v1352 = vadd.f32 %v1351, 1.0
    %v1353 = vrcp.pop %v1352
    %v1354 = vmul.f32 1.0, %v1353
    %v1355 = vtanh.pop %v1348
    %v1356 = vmul.f32 %v1354, %v1213
    %1358 = vrot.lane.b32.xlu0 %v1355, 32
    %v1359 = vpop.permute.xlu0 %1358
    %v1361 = vmul.f32 %v1354, %v1359
    %1363 = vrot.lane.b32.xlu0 %v1361, 32
    %v1364 = vpop.permute.xlu0 %1363
    %v1366 = vadd.f32 %v1356, %v1364
    %v1367 = vtanh.pop %v1366
    %1369 = vrot.lane.b32.xlu0 %v1367, 32
    %v1370 = vpop.permute.xlu0 %1369
    %v1372 = vmul.f32 %v1354, %v1370
    %v1373 = vstv %s1215
    %vm1374 = vcmp.lt.s32.totalorder %v1373, %v329
    %v1375 = vsel %vm1374, 1, 0
    %1376 = vset.pattern.permute.xlu0 0
    %1377 = vperm.xlu0 %1376, %v1375
    %v1378 = vpop.permute.xlu0 %1377
    %vm1379 = vcmp.eq.s32.totalorder %v1378, 1
    %v1380 = vsel %vm1379, %v1372, %v1212
    %v1381 = vsel %vm1379, %v1366, %v1213
    %s1382 = sadd.s32 %s46, 6
    %s1383 = ssub.s32 1, %s46
    %s1384 = scalar_lea.vmem [#allocation4], 48
    %v1385 = vld [vmem:[%s1384] sm:$0xff]
    %v1386 = vpack.c.bf16 %v1297, %v1297
    %1388 = vrot.lane.b32.xlu0 %v1386, 64
    %v1389 = vpop.permute.xlu0 %1388
    %v1391 = vsel %vm107, %v1389, 0
    %1393 = vmatprep.subr.bf16.mxu0 0
    %1394 = vmatpush1.bf16.msra.mxu0 0
    %1395 = vmatprep.subr.bf16.mxu0 0
    %1396 = vmatpush1.bf16.msra.mxu0 0
    %1397 = vmatprep.subr.bf16.mxu0 0
    %1398 = vmatpush1.bf16.msra.mxu0 0
    %1399 = vmatprep.subr.bf16.mxu0 0
    %1400 = vmatpush1.bf16.msra.mxu0 0
    %1401 = vmatprep.subr.bf16.mxu0 0
    %1402 = vmatpush1.bf16.msra.mxu0 0
    %1403 = vmatprep.subr.bf16.mxu0 0
    %1404 = vmatpush1.bf16.msra.mxu0 0
    %1405 = vmatprep.subr.bf16.mxu0 0
    %1406 = vmatpush1.bf16.msra.mxu0 %v354
    %1407 = vmatprep.subr.bf16.mxu0 0
    %1408 = vmatpush1.bf16.msra.mxu0 %v353
    %1409 = vmatprep.subr.bf16.mxu0 0
    %1410 = vmatpush2.bf16.msra.mxu0 0
    %1411 = vmatprep.subr.bf16.mxu0 0
    %1412 = vmatpush2.bf16.msra.mxu0 0
    %1413 = vmatprep.subr.bf16.mxu0 0
    %1414 = vmatpush2.bf16.msra.mxu0 0
    %1415 = vmatprep.subr.bf16.mxu0 0
    %1416 = vmatpush2.bf16.msra.mxu0 0
    %1417 = vmatprep.subr.bf16.mxu0 0
    %1418 = vmatpush2.bf16.msra.mxu0 0
    %1419 = vmatprep.subr.bf16.mxu0 0
    %1420 = vmatpush2.bf16.msra.mxu0 0
    %1421 = vmatprep.subr.bf16.mxu0 0
    %1422 = vmatpush2.bf16.msra.mxu0 0
    %1423 = vmatprep.subr.bf16.mxu0 0
    %1424 = vmatpush2.bf16.msra.mxu0 0
    %1425 = vmatprep.mubr.bf16.mxu0 0
    %1426 = vmatmul.mubr.bf16.gmra.mxu0 %v1391
    %v1427 = vpop.f32.mrf.mxu0
    %v1428 = vadd.f32 0.0, %v1427
    %v1429 = vpop.f32.mrf.mxu0
    %v1430 = vpop.f32.mrf.mxu0
    %v1431 = vpop.f32.mrf.mxu0
    %1432 = vdwg.mxu0
    %v1433 = vadd.f32 %v1385, %v1428
    %v1434 = vxor.u32 %v1433, 2147483648
    %v1435 = vmul.f32 %v1434, 1.442695
    %v1436 = vpow.pop %v1435
    %v1437 = vadd.f32 %v1436, 1.0
    %v1438 = vrcp.pop %v1437
    %v1439 = vmul.f32 1.0, %v1438
    %v1440 = vtanh.pop %v1433
    %v1441 = vmul.f32 %v1439, %v1298
    %1443 = vrot.lane.b32.xlu0 %v1440, 32
    %v1444 = vpop.permute.xlu0 %1443
    %v1446 = vmul.f32 %v1439, %v1444
    %1448 = vrot.lane.b32.xlu0 %v1446, 32
    %v1449 = vpop.permute.xlu0 %1448
    %v1451 = vadd.f32 %v1441, %v1449
    %v1452 = vtanh.pop %v1451
    %1454 = vrot.lane.b32.xlu0 %v1452, 32
    %v1455 = vpop.permute.xlu0 %1454
    %v1457 = vmul.f32 %v1439, %v1455
    %v1458 = vstv %s1382
    %vm1459 = vcmp.lt.s32.totalorder %v1458, %v329
    %v1460 = vsel %vm1459, 1, 0
    %1461 = vset.pattern.permute.xlu0 0
    %1462 = vperm.xlu0 %1461, %v1460
    %v1463 = vpop.permute.xlu0 %1462
    %vm1464 = vcmp.eq.s32.totalorder %v1463, 1
    %v1465 = vsel %vm1464, %v1457, %v1297
    %v1466 = vsel %vm1464, %v1451, %v1298
    %s1467 = scalar_lea.vmem [#allocation5], 8
    %v1468 = vld [vmem:[%s1467] sm:$0xff]
    %v1469 = vpack.c.bf16 %v1380, %v1380
    %1471 = vrot.lane.b32.xlu0 %v1469, 64
    %v1472 = vpop.permute.xlu0 %1471
    %v1474 = vsel %vm107, %v1472, 0
    %1476 = vmatprep.subr.bf16.mxu0 0
    %1477 = vmatpush1.bf16.msra.mxu0 0
    %1478 = vmatprep.subr.bf16.mxu0 0
    %1479 = vmatpush1.bf16.msra.mxu0 0
    %1480 = vmatprep.subr.bf16.mxu0 0
    %1481 = vmatpush1.bf16.msra.mxu0 0
    %1482 = vmatprep.subr.bf16.mxu0 0
    %1483 = vmatpush1.bf16.msra.mxu0 0
    %1484 = vmatprep.subr.bf16.mxu0 0
    %1485 = vmatpush1.bf16.msra.mxu0 0
    %1486 = vmatprep.subr.bf16.mxu0 0
    %1487 = vmatpush1.bf16.msra.mxu0 0
    %1488 = vmatprep.subr.bf16.mxu0 0
    %1489 = vmatpush1.bf16.msra.mxu0 %v454
    %1490 = vmatprep.subr.bf16.mxu0 0
    %1491 = vmatpush1.bf16.msra.mxu0 %v453
    %1492 = vmatprep.subr.bf16.mxu0 0
    %1493 = vmatpush2.bf16.msra.mxu0 0
    %1494 = vmatprep.subr.bf16.mxu0 0
    %1495 = vmatpush2.bf16.msra.mxu0 0
    %1496 = vmatprep.subr.bf16.mxu0 0
    %1497 = vmatpush2.bf16.msra.mxu0 0
    %1498 = vmatprep.subr.bf16.mxu0 0
    %1499 = vmatpush2.bf16.msra.mxu0 0
    %1500 = vmatprep.subr.bf16.mxu0 0
    %1501 = vmatpush2.bf16.msra.mxu0 0
    %1502 = vmatprep.subr.bf16.mxu0 0
    %1503 = vmatpush2.bf16.msra.mxu0 0
    %1504 = vmatprep.subr.bf16.mxu0 0
    %1505 = vmatpush2.bf16.msra.mxu0 0
    %1506 = vmatprep.subr.bf16.mxu0 0
    %1507 = vmatpush2.bf16.msra.mxu0 0
    %1508 = vmatprep.mubr.bf16.mxu0 0
    %1509 = vmatmul.mubr.bf16.gmra.mxu0 %v1474
    %v1510 = vpop.f32.mrf.mxu0
    %v1511 = vadd.f32 0.0, %v1510
    %v1512 = vpop.f32.mrf.mxu0
    %v1513 = vpop.f32.mrf.mxu0
    %v1514 = vpop.f32.mrf.mxu0
    %1515 = vdwg.mxu0
    %v1516 = vadd.f32 %v1468, %v1511
    %v1517 = vxor.u32 %v1516, 2147483648
    %v1518 = vmul.f32 %v1517, 1.442695
    %v1519 = vpow.pop %v1518
    %v1520 = vadd.f32 %v1519, 1.0
    %v1521 = vrcp.pop %v1520
    %v1522 = vmul.f32 1.0, %v1521
    %v1523 = vtanh.pop %v1516
    %v1524 = vmul.f32 %v1522, %v1381
    %1526 = vrot.lane.b32.xlu0 %v1523, 32
    %v1527 = vpop.permute.xlu0 %1526
    %v1529 = vmul.f32 %v1522, %v1527
    %1531 = vrot.lane.b32.xlu0 %v1529, 32
    %v1532 = vpop.permute.xlu0 %1531
    %v1534 = vadd.f32 %v1524, %v1532
    %v1535 = vtanh.pop %v1534
    %1537 = vrot.lane.b32.xlu0 %v1535, 32
    %v1538 = vpop.permute.xlu0 %1537
    %v1540 = vmul.f32 %v1522, %v1538
    %v1541 = vstv %s1383
    %vm1542 = vcmp.lt.s32.totalorder %v1541, %v329
    %v1543 = vsel %vm1542, 1, 0
    %1544 = vset.pattern.permute.xlu0 0
    %1545 = vperm.xlu0 %1544, %v1543
    %v1546 = vpop.permute.xlu0 %1545
    %vm1547 = vcmp.eq.s32.totalorder %v1546, 1
    %v1548 = vsel %vm1547, %v1540, %v1380
    %v1549 = vsel %vm1547, %v1534, %v1381
    %s1550 = sadd.s32 %s46, 7
    %s1551 = ssub.s32 0, %s46
    %s1552 = scalar_lea.vmem [#allocation4], 56
    %v1553 = vld [vmem:[%s1552] sm:$0xff]
    %v1554 = vpack.c.bf16 %v1465, %v1465
    %1556 = vrot.lane.b32.xlu0 %v1554, 64
    %v1557 = vpop.permute.xlu0 %1556
    %v1559 = vsel %vm107, %v1557, 0
    %1561 = vmatprep.subr.bf16.mxu0 0
    %1562 = vmatpush1.bf16.msra.mxu0 0
    %1563 = vmatprep.subr.bf16.mxu0 0
    %1564 = vmatpush1.bf16.msra.mxu0 0
    %1565 = vmatprep.subr.bf16.mxu0 0
    %1566 = vmatpush1.bf16.msra.mxu0 0
    %1567 = vmatprep.subr.bf16.mxu0 0
    %1568 = vmatpush1.bf16.msra.mxu0 0
    %1569 = vmatprep.subr.bf16.mxu0 0
    %1570 = vmatpush1.bf16.msra.mxu0 0
    %1571 = vmatprep.subr.bf16.mxu0 0
    %1572 = vmatpush1.bf16.msra.mxu0 0
    %1573 = vmatprep.subr.bf16.mxu0 0
    %1574 = vmatpush1.bf16.msra.mxu0 %v354
    %1575 = vmatprep.subr.bf16.mxu0 0
    %1576 = vmatpush1.bf16.msra.mxu0 %v353
    %1577 = vmatprep.subr.bf16.mxu0 0
    %1578 = vmatpush2.bf16.msra.mxu0 0
    %1579 = vmatprep.subr.bf16.mxu0 0
    %1580 = vmatpush2.bf16.msra.mxu0 0
    %1581 = vmatprep.subr.bf16.mxu0 0
    %1582 = vmatpush2.bf16.msra.mxu0 0
    %1583 = vmatprep.subr.bf16.mxu0 0
    %1584 = vmatpush2.bf16.msra.mxu0 0
    %1585 = vmatprep.subr.bf16.mxu0 0
    %1586 = vmatpush2.bf16.msra.mxu0 0
    %1587 = vmatprep.subr.bf16.mxu0 0
    %1588 = vmatpush2.bf16.msra.mxu0 0
    %1589 = vmatprep.subr.bf16.mxu0 0
    %1590 = vmatpush2.bf16.msra.mxu0 0
    %1591 = vmatprep.subr.bf16.mxu0 0
    %1592 = vmatpush2.bf16.msra.mxu0 0
    %1593 = vmatprep.mubr.bf16.mxu0 0
    %1594 = vmatmul.mubr.bf16.gmra.mxu0 %v1559
    %v1595 = vpop.f32.mrf.mxu0
    %v1596 = vadd.f32 0.0, %v1595
    %v1597 = vpop.f32.mrf.mxu0
    %v1598 = vpop.f32.mrf.mxu0
    %v1599 = vpop.f32.mrf.mxu0
    %1600 = vdwg.mxu0
    %v1601 = vadd.f32 %v1553, %v1596
    %v1602 = vxor.u32 %v1601, 2147483648
    %v1603 = vmul.f32 %v1602, 1.442695
    %v1604 = vpow.pop %v1603
    %v1605 = vadd.f32 %v1604, 1.0
    %v1606 = vrcp.pop %v1605
    %v1607 = vmul.f32 1.0, %v1606
    %v1608 = vtanh.pop %v1601
    %v1609 = vmul.f32 %v1607, %v1466
    %1611 = vrot.lane.b32.xlu0 %v1608, 32
    %v1612 = vpop.permute.xlu0 %1611
    %v1614 = vmul.f32 %v1607, %v1612
    %1616 = vrot.lane.b32.xlu0 %v1614, 32
    %v1617 = vpop.permute.xlu0 %1616
    %v1619 = vadd.f32 %v1609, %v1617
    %v1620 = vtanh.pop %v1619
    %1622 = vrot.lane.b32.xlu0 %v1620, 32
    %v1623 = vpop.permute.xlu0 %1622
    %v1625 = vmul.f32 %v1607, %v1623
    %v1626 = vstv %s1550
    %vm1627 = vcmp.lt.s32.totalorder %v1626, %v329
    %v1628 = vsel %vm1627, 1, 0
    %1629 = vset.pattern.permute.xlu0 0
    %1630 = vperm.xlu0 %1629, %v1628
    %v1631 = vpop.permute.xlu0 %1630
    %vm1632 = vcmp.eq.s32.totalorder %v1631, 1
    %v1633 = vsel %vm1632, %v1625, %v1465
    %v1634 = vsel %vm1632, %v1619, %v1466
    %v1635 = vld [vmem:[#allocation5] sm:$0xff]
    %v1636 = vpack.c.bf16 %v1548, %v1548
    %1638 = vrot.lane.b32.xlu0 %v1636, 64
    %v1639 = vpop.permute.xlu0 %1638
    %v1641 = vsel %vm107, %v1639, 0
    %1643 = vmatprep.subr.bf16.mxu0 0
    %1644 = vmatpush1.bf16.msra.mxu0 0
    %1645 = vmatprep.subr.bf16.mxu0 0
    %1646 = vmatpush1.bf16.msra.mxu0 0
    %1647 = vmatprep.subr.bf16.mxu0 0
    %1648 = vmatpush1.bf16.msra.mxu0 0
    %1649 = vmatprep.subr.bf16.mxu0 0
    %1650 = vmatpush1.bf16.msra.mxu0 0
    %1651 = vmatprep.subr.bf16.mxu0 0
    %1652 = vmatpush1.bf16.msra.mxu0 0
    %1653 = vmatprep.subr.bf16.mxu0 0
    %1654 = vmatpush1.bf16.msra.mxu0 0
    %1655 = vmatprep.subr.bf16.mxu0 0
    %1656 = vmatpush1.bf16.msra.mxu0 %v454
    %1657 = vmatprep.subr.bf16.mxu0 0
    %1658 = vmatpush1.bf16.msra.mxu0 %v453
    %1659 = vmatprep.subr.bf16.mxu0 0
    %1660 = vmatpush2.bf16.msra.mxu0 0
    %1661 = vmatprep.subr.bf16.mxu0 0
    %1662 = vmatpush2.bf16.msra.mxu0 0
    %1663 = vmatprep.subr.bf16.mxu0 0
    %1664 = vmatpush2.bf16.msra.mxu0 0
    %1665 = vmatprep.subr.bf16.mxu0 0
    %1666 = vmatpush2.bf16.msra.mxu0 0
    %1667 = vmatprep.subr.bf16.mxu0 0
    %1668 = vmatpush2.bf16.msra.mxu0 0
    %1669 = vmatprep.subr.bf16.mxu0 0
    %1670 = vmatpush2.bf16.msra.mxu0 0
    %1671 = vmatprep.subr.bf16.mxu0 0
    %1672 = vmatpush2.bf16.msra.mxu0 0
    %1673 = vmatprep.subr.bf16.mxu0 0
    %1674 = vmatpush2.bf16.msra.mxu0 0
    %1675 = vmatprep.mubr.bf16.mxu0 0
    %1676 = vmatmul.mubr.bf16.gmra.mxu0 %v1641
    %v1677 = vpop.f32.mrf.mxu0
    %v1678 = vadd.f32 0.0, %v1677
    %v1679 = vpop.f32.mrf.mxu0
    %v1680 = vpop.f32.mrf.mxu0
    %v1681 = vpop.f32.mrf.mxu0
    %1682 = vdwg.mxu0
    %v1683 = vadd.f32 %v1635, %v1678
    %v1684 = vxor.u32 %v1683, 2147483648
    %v1685 = vmul.f32 %v1684, 1.442695
    %v1686 = vpow.pop %v1685
    %v1687 = vadd.f32 %v1686, 1.0
    %v1688 = vrcp.pop %v1687
    %v1689 = vmul.f32 1.0, %v1688
    %v1690 = vtanh.pop %v1683
    %v1691 = vmul.f32 %v1689, %v1549
    %1693 = vrot.lane.b32.xlu0 %v1690, 32
    %v1694 = vpop.permute.xlu0 %1693
    %v1696 = vmul.f32 %v1689, %v1694
    %1698 = vrot.lane.b32.xlu0 %v1696, 32
    %v1699 = vpop.permute.xlu0 %1698
    %v1701 = vadd.f32 %v1691, %v1699
    %v1702 = vtanh.pop %v1701
    %1704 = vrot.lane.b32.xlu0 %v1702, 32
    %v1705 = vpop.permute.xlu0 %1704
    %v1707 = vmul.f32 %v1689, %v1705
    %v1708 = vstv %s1551
    %vm1709 = vcmp.lt.s32.totalorder %v1708, %v329
    %v1710 = vsel %vm1709, 1, 0
    %1711 = vset.pattern.permute.xlu0 0
    %1712 = vperm.xlu0 %1711, %v1710
    %v1713 = vpop.permute.xlu0 %1712
    %vm1714 = vcmp.eq.s32.totalorder %v1713, 1
    %v1715 = vsel %vm1714, %v1707, %v1548
    %v1716 = vsel %vm1714, %v1701, %v1549
    %1718 = vrot.lane.b32.xlu0 %v1633, 64
    %v1719 = vpop.permute.xlu0 %1718
    %1721 = vst.msk [vmem:[#allocation9] sm:$0xff] %vm107, %v1719
    %1723 = vrot.lane.b32.xlu0 %v1634, 96
    %v1724 = vpop.permute.xlu0 %1723
    %1726 = vst.msk [vmem:[#allocation2] sm:$0xff] %vm107, %v1724
    %1728 = vrot.lane.b32.xlu0 %v1715, 64
    %v1729 = vpop.permute.xlu0 %1728
    %1731 = vst.msk [vmem:[#allocation10] sm:$0xff] %vm107, %v1729
    %1733 = vrot.lane.b32.xlu0 %v1716, 96
    %v1734 = vpop.permute.xlu0 %1733
    %1736 = vst.msk [vmem:[#allocation3] sm:$0xff] %vm107, %v1734
    // Predicated region
    $region42: #{tpu_custom_call.1} parent=1 // pred_check
      _
    $region43: #{tpu_custom_call.1} parent=1 // pred_check_branch
      %1738 = sbr.rel (0) target = $region45
    $region44: #{tpu_custom_call.1} parent=1 // pred_region
      %s1740 = ssub.s32 128, 128
      %1741 = vsyncadd [#allocation8], %s1740
      %s1743 = sshll.u32 [#allocation9], 4
      %s1744 = int_to_ptr.vmem [resolvable:$true] %s1743
      %1746 = dma.vmem_to_hbm [thread:$0]  %s1744, 128, %s8, [#allocation8]
    $region45: #{tpu_custom_call.1} parent=1 // pred_fallthru
      _
    // Predicated region
    $region46: #{tpu_custom_call.1} parent=1 // pred_check
      _
    $region47: #{tpu_custom_call.1} parent=1 // pred_check_branch
      %1748 = sbr.rel (0) target = $region49
    $region48: #{tpu_custom_call.1} parent=1 // pred_region
      %s1750 = ssub.s32 128, 128
      %1751 = vsyncadd [#allocation11], %s1750
      %s1753 = sshll.u32 [#allocation10], 4
      %s1754 = int_to_ptr.vmem [resolvable:$true] %s1753
      %1756 = dma.vmem_to_hbm [thread:$0]  %s1754, 128, %s9, [#allocation11]
    $region49: #{tpu_custom_call.1} parent=1 // pred_fallthru
      _
    // Predicated region
    $region50: #{tpu_custom_call.1} parent=1 // pred_check
      _
    $region51: #{tpu_custom_call.1} parent=1 // pred_check_branch
      %1758 = sbr.rel (0) target = $region53
    $region52: #{tpu_custom_call.1} parent=1 // pred_region
      %1759 = dma.done [#allocation8], 128
    $region53: #{tpu_custom_call.1} parent=1 // pred_fallthru
      _
    // Predicated region
    $region54: #{tpu_custom_call.1} parent=1 // pred_check
      _
    $region55: #{tpu_custom_call.1} parent=1 // pred_check_branch
      %1761 = sbr.rel (0) target = $region57
    $region56: #{tpu_custom_call.1} parent=1 // pred_region
      %1762 = dma.done [#allocation11], 128
    $region57: #{tpu_custom_call.1} parent=1 // pred_fallthru
      _
    %1763 = vsyncpa [#allocation7], 1
    %1764 = vsyncpa [#allocation8], 1
    %1765 = vsyncpa [#allocation11], 1

</llo_original>
